<compile_context>
chip_gen: v5e
topology: v5e:2x2
jax: 0.10.0
libtpu: 0.0.40
codegen_flags: <defaults>
</compile_context>

<pallas_src>
import functools

import jax
import jax.numpy as jnp
from jax.experimental import pallas as pl
from jax.experimental.pallas import tpu as pltpu

KSIZE = 3        # padding=1 => kernel_size=3 "same"-style conv
EPS = 1e-5       # nn.BatchNorm1d default
LANES = 128      # TPU lane width


def _round_up(v, m):
    return -(-v // m) * m


def _vmem_budget_bytes():
    """~75% of this generation's VMEM (v5e/v6e: ~96 MiB, v7x: ~48 MiB)."""
    try:
        cap = int(pltpu.get_tpu_info().vmem_capacity_bytes)
    except Exception:
        cap = 64 * 1024 * 1024
    return int(cap * 3 // 4)


def _tile_vmem_bytes(nb, L, L2, cin_p, cout_p):
    """Conservative per-grid-step VMEM footprint (double-buffered I/O + scratch
    + large intermediate values)."""
    bf, f32 = 2, 4
    k1 = (2 * nb * L * cin_p * bf                              # x block (dbuf)
          + 2 * nb * L2 * cout_p * bf                          # y block (dbuf)
          + 2 * (KSIZE * cin_p + KSIZE * cout_p) * cout_p * bf  # weights (dbuf)
          + nb * L * KSIZE * cin_p * bf                        # xcat scratch
          + nb * L * cout_p * f32                              # h1 scratch
          + nb * L2 * KSIZE * cout_p * bf                      # hcat scratch
          + nb * L * cout_p * f32                              # h1 value
          + 2 * nb * L2 * cout_p * f32                         # y / y*y values
          + 4 * cout_p * f32)                                  # stat blocks
    k2 = (2 * nb * L2 * cout_p * bf                            # y block (dbuf)
          + 2 * nb * cout_p * L2 * f32                         # out block (dbuf)
          + nb * L2 * cout_p * f32                             # f32 value
          + 2 * nb * cout_p * f32 + 2 * cout_p * f32)
    return max(k1, k2)


def _pick_batch_tile(N, L, L2, cin_p, cout_p, budget):
    """Largest batch tile that fits the VMEM budget while keeping >= 2 grid
    steps (so v7x's two TensorCores both get work)."""
    min_tiles = 2 if N >= 2 else 1
    best = 1
    for nb in range(1, N + 1):
        if N % nb:
            continue
        if N // nb < min_tiles:
            continue
        if _tile_vmem_bytes(nb, L, L2, cin_p, cout_p) <= budget:
            best = nb
    return best


def conv_stats_kernel(x_ref, w1_ref, w2_ref, y_ref, sum_ref, sq_ref,
                      xcat_s, h1_s, hcat_s):
    """conv1 (s=1,p=1) + conv2 (s=2,p=1) for one batch tile, channels-last.

    Also emits per-tile per-channel sum / sum-of-squares of the conv2 output so
    the global BatchNorm statistics can be reduced outside without re-reading y.
    Channel counts seen here are already padded to multiples of 128 lanes.
    """
    NB, L, Cin = x_ref.shape
    Cout = w1_ref.shape[1]
    L2 = y_ref.shape[1]
    bf16 = jnp.bfloat16

    # ---- im2col for conv1: taps stacked on the lane-aligned contraction axis --
    xv = x_ref[...]                                                     # bf16 (NB, L, Cin)
    xcat_s[:, :, Cin:2 * Cin] = xv                                      # center tap
    xcat_s[:, 0:1, 0:Cin] = jnp.zeros((NB, 1, Cin), bf16)               # left halo
    if L > 1:
        xcat_s[:, 1:L, 0:Cin] = xv[:, 0:L - 1, :]                       # left tap
        xcat_s[:, 0:L - 1, 2 * Cin:3 * Cin] = xv[:, 1:L, :]             # right tap
    xcat_s[:, L - 1:L, 2 * Cin:3 * Cin] = jnp.zeros((NB, 1, Cin), bf16)  # right halo

    # ---- conv1: one fused MXU dot, K = 3*Cin (bf16 x bf16 -> f32 acc) ---------
    a1 = xcat_s[...].reshape(NB * L, KSIZE * Cin)
    h1 = jnp.dot(a1, w1_ref[...], preferred_element_type=jnp.float32)   # (NB*L, Cout)
    # f32 scratch only so the strided even/odd reads below stay on a 32-bit type.
    h1_s[...] = h1.reshape(NB, L, Cout)

    # ---- im2col for conv2 (stride 2): even/odd deinterleave -------------------
    # Output position j uses h1[2j-1], h1[2j], h1[2j+1] (pads at -1 and L).
    n_odd = L // 2
    h_even = h1_s[:, pl.ds(0, L2, 2), :]                                # rows 0,2,... (L2 rows)
    h_odd = h1_s[:, pl.ds(1, n_odd, 2), :] if n_odd > 0 else None       # rows 1,3,...
    # bf16 cast here = the reference's bf16 rounding point for h1.
    hcat_s[:, :, Cout:2 * Cout] = h_even.astype(bf16)                   # center tap
    hcat_s[:, 0:1, 0:Cout] = jnp.zeros((NB, 1, Cout), bf16)             # left halo
    if L2 > 1:
        hcat_s[:, 1:L2, 0:Cout] = h_odd[:, 0:L2 - 1, :].astype(bf16)    # left tap
    if n_odd == L2:                                                     # L even: right tap fully in range
        hcat_s[:, :, 2 * Cout:3 * Cout] = h_odd.astype(bf16)
    else:                                                               # L odd (or L == 1): last right tap = padding
        if n_odd > 0:
            hcat_s[:, 0:n_odd, 2 * Cout:3 * Cout] = h_odd.astype(bf16)
        hcat_s[:, L2 - 1:L2, 2 * Cout:3 * Cout] = jnp.zeros((NB, 1, Cout), bf16)

    # ---- conv2: one fused MXU dot, K = 3*Cout ---------------------------------
    a2 = hcat_s[...].reshape(NB * L2, KSIZE * Cout)
    y = jnp.dot(a2, w2_ref[...], preferred_element_type=jnp.float32)
    y = y.reshape(NB, L2, Cout)

    # ---- BatchNorm statistics from the f32 accumulator (before the bf16 cast) -
    sum_ref[...] = jnp.sum(y, axis=(0, 1), keepdims=True)
    sq_ref[...] = jnp.sum(y * y, axis=(0, 1), keepdims=True)
    y_ref[...] = y.astype(y_ref.dtype)                                  # bf16 to HBM


def bn_relu_pool_kernel(y_ref, scale_ref, shift_ref, out_ref, res_ref, *,
                        ncl_out):
    """Global BatchNorm (as scale/shift) + ReLU + AdaptiveAvgPool1d(1).

    ncl_out=True  : emit the (C, L2) NCL layout directly (in-register transpose
                    per batch element) — no wrapper-side transpose HBM pass.
    ncl_out=False : channels-last fallback for ragged L2 (transpose done by XLA).
    """
    NB, L2, C = y_ref.shape
    scale = scale_ref[...]                                   # (1, C) f32
    shift = shift_ref[...]
    if ncl_out:
        for b in range(NB):                                  # static unroll over batch tile
            yb = y_ref[b].astype(jnp.float32)                # (L2, C)
            ob = jnp.maximum(yb * scale + shift, 0.0)
            obt = jnp.transpose(ob)                          # (C, L2) — NCL
            out_ref[b] = obt
            res_ref[b] = jnp.mean(obt, axis=-1, keepdims=True)
    else:
        o = jnp.maximum(
            y_ref[...].astype(jnp.float32) * scale.reshape(1, 1, C)
            + shift.reshape(1, 1, C), 0.0)
        out_ref[...] = o
        res_ref[...] = jnp.mean(o, axis=1, keepdims=True)


def basic_block_forward(x, w1, w2, gamma, beta, *, batch_tile=None):
    """x: (N, Cin, L); w1: (Cout, Cin, 3); w2: (Cout, Cout, 3) (PyTorch layouts).
    Returns (out, res): out (N, Cout, L2) f32, res (N, Cout, 1) f32."""
    N, Cin, L = x.shape
    Cout = w1.shape[0]
    L2 = (L - 1) // 2 + 1
    cin_p = _round_up(Cin, LANES)
    cout_p = _round_up(Cout, LANES)

    budget = _vmem_budget_bytes()
    NB = (_pick_batch_tile(N, L, L2, cin_p, cout_p, budget)
          if batch_tile is None else batch_tile)
    assert N % NB == 0, "batch_tile must divide N"
    n_tiles = N // NB

    # Glue (fuses into one XLA pass): NCL -> channels-last, zero-pad channels to
    # the 128-lane boundary (lane-aligned tap offsets + full MXU lanes), bf16.
    x_nlc = jnp.transpose(x, (0, 2, 1))                                   # (N, L, Cin)
    x_nlc = jnp.pad(x_nlc, ((0, 0), (0, 0), (0, cin_p - Cin))).astype(jnp.bfloat16)

    w1t = jnp.pad(jnp.transpose(w1, (2, 1, 0)),                           # (3, Cin, Cout)
                  ((0, 0), (0, cin_p - Cin), (0, cout_p - Cout)))
    w1c = w1t.reshape(KSIZE * cin_p, cout_p).astype(jnp.bfloat16)
    w2t = jnp.pad(jnp.transpose(w2, (2, 1, 0)),
                  ((0, 0), (0, cout_p - Cout), (0, cout_p - Cout)))
    w2c = w2t.reshape(KSIZE * cout_p, cout_p).astype(jnp.bfloat16)

    flops1 = 2 * N * L * (KSIZE * cin_p) * cout_p + 2 * N * L2 * (KSIZE * cout_p) * cout_p
    bytes1 = (N * L * cin_p * 2 + (KSIZE * cin_p + KSIZE * cout_p) * cout_p * 2
              + N * L2 * cout_p * 2 + 2 * n_tiles * cout_p * 4)

    y_conv, sums, sqs = pl.pallas_call(
        conv_stats_kernel,
        grid=(n_tiles,),
        in_specs=[
            pl.BlockSpec((NB, L, cin_p), lambda i: (i, 0, 0)),
            pl.BlockSpec((KSIZE * cin_p, cout_p), lambda i: (0, 0)),
            pl.BlockSpec((KSIZE * cout_p, cout_p), lambda i: (0, 0)),
        ],
        out_specs=[
            pl.BlockSpec((NB, L2, cout_p), lambda i: (i, 0, 0)),
            pl.BlockSpec((1, 1, cout_p), lambda i: (i, 0, 0)),
            pl.BlockSpec((1, 1, cout_p), lambda i: (i, 0, 0)),
        ],
        out_shape=[
            jax.ShapeDtypeStruct((N, L2, cout_p), jnp.bfloat16),   # bf16 intermediate
            jax.ShapeDtypeStruct((n_tiles, 1, cout_p), jnp.float32),
            jax.ShapeDtypeStruct((n_tiles, 1, cout_p), jnp.float32),
        ],
        scratch_shapes=[
            pltpu.VMEM((NB, L, KSIZE * cin_p), jnp.bfloat16),      # conv1 im2col staging
            pltpu.VMEM((NB, L, cout_p), jnp.float32),              # conv1 output (strided reads)
            pltpu.VMEM((NB, L2, KSIZE * cout_p), jnp.bfloat16),    # conv2 im2col staging
        ],
        compiler_params=pltpu.CompilerParams(
            dimension_semantics=("parallel",),
            vmem_limit_bytes=budget),
        cost_estimate=pl.CostEstimate(flops=flops1, transcendentals=0,
                                      bytes_accessed=bytes1),
    )(x_nlc, w1c, w2c)

    # Tiny cross-tile reduction -> global training-mode BN scale/shift (f32).
    cnt = jnp.float32(N * L2)
    mean = jnp.sum(sums, axis=0) / cnt                         # (1, cout_p)
    ex2 = jnp.sum(sqs, axis=0) / cnt
    var = jnp.maximum(ex2 - mean * mean, 0.0)                  # biased variance
    inv = jax.lax.rsqrt(var + EPS)
    g = jnp.pad(gamma, (0, cout_p - Cout)).reshape(1, cout_p).astype(jnp.float32)
    b = jnp.pad(beta, (0, cout_p - Cout)).reshape(1, cout_p).astype(jnp.float32)
    scale = g * inv
    shift = b - mean * scale

    # NCL fast path only when L2 is sublane-aligned (native in-kernel transpose);
    # ragged L2 uses the channels-last fallback + XLA transpose.
    ncl = (L2 % 8 == 0)
    if ncl:
        out_specs2 = [pl.BlockSpec((NB, cout_p, L2), lambda i: (i, 0, 0)),
                      pl.BlockSpec((NB, cout_p, 1), lambda i: (i, 0, 0))]
        out_shapes2 = [jax.ShapeDtypeStruct((N, cout_p, L2), jnp.float32),
                       jax.ShapeDtypeStruct((N, cout_p, 1), jnp.float32)]
    else:
        out_specs2 = [pl.BlockSpec((NB, L2, cout_p), lambda i: (i, 0, 0)),
                      pl.BlockSpec((NB, 1, cout_p), lambda i: (i, 0, 0))]
        out_shapes2 = [jax.ShapeDtypeStruct((N, L2, cout_p), jnp.float32),
                       jax.ShapeDtypeStruct((N, 1, cout_p), jnp.float32)]

    flops2 = 4 * N * L2 * cout_p
    bytes2 = N * L2 * cout_p * 2 + N * cout_p * L2 * 4 + N * cout_p * 4 + 2 * cout_p * 4

    # TODO(synk): if a trace shows exposed DMA on the y input at large tiles, add
    # pipeline_mode=pl.Buffered(3) on its BlockSpec (verify VMEM headroom on v7x).
    out_p, res_p = pl.pallas_call(
        functools.partial(bn_relu_pool_kernel, ncl_out=ncl),
        grid=(n_tiles,),
        in_specs=[
            pl.BlockSpec((NB, L2, cout_p), lambda i: (i, 0, 0)),
            pl.BlockSpec((1, cout_p), lambda i: (0, 0)),
            pl.BlockSpec((1, cout_p), lambda i: (0, 0)),
        ],
        out_specs=out_specs2,
        out_shape=out_shapes2,
        compiler_params=pltpu.CompilerParams(
            dimension_semantics=("parallel",),
            vmem_limit_bytes=budget),
        cost_estimate=pl.CostEstimate(flops=flops2, transcendentals=0,
                                      bytes_accessed=bytes2),
    )(y_conv, scale, shift)

    if ncl:
        out, res = out_p, res_p
    else:
        out = jnp.transpose(out_p, (0, 2, 1))
        res = jnp.transpose(res_p, (0, 2, 1))
    if cout_p != Cout:
        out = out[:, :Cout, :]
        res = res[:, :Cout, :]
    return out, res


def _reference(x, w1, w2, gamma, beta):
    """Pure-JAX reference mirroring the PyTorch forward (training-mode BN), with
    the same bf16 rounding points as the kernel path (inputs, weights, conv1
    output, and the conv2 output on its way to the BN-apply kernel)."""
    f32 = jnp.float32
    xb = x.astype(jnp.bfloat16).astype(f32)
    w1b = w1.astype(jnp.bfloat16).astype(f32)
    w2b = w2.astype(jnp.bfloat16).astype(f32)
    dn = ('NCH', 'OIH', 'NCH')
    h1 = jax.lax.conv_general_dilated(xb, w1b, window_strides=(1,),
                                      padding=[(1, 1)], dimension_numbers=dn)
    h1 = h1.astype(jnp.bfloat16).astype(f32)
    h2 = jax.lax.conv_general_dilated(h1, w2b, window_strides=(2,),
                                      padding=[(1, 1)], dimension_numbers=dn)
    mu = jnp.mean(h2, axis=(0, 2), keepdims=True)
    var = jnp.mean((h2 - mu) ** 2, axis=(0, 2), keepdims=True)       # biased variance
    h2b = h2.astype(jnp.bfloat16).astype(f32)                        # bf16 HBM hop
    y = (gamma[None, :, None] * (h2b - mu) * jax.lax.rsqrt(var + EPS)
         + beta[None, :, None])
    y = jnp.maximum(y, 0.0)
    return y, jnp.mean(y, axis=2, keepdims=True)


if __name__ == "__main__":
    key = jax.random.PRNGKey(0)

    def run_case(case_key, N, Cin, Cout, L):
        k1, k2, k3, k4, k5 = jax.random.split(case_key, 5)
        x = jax.random.normal(k1, (N, Cin, L), jnp.float32)
        w1 = 0.2 * jax.random.normal(k2, (Cout, Cin, KSIZE), jnp.float32)
        w2 = 0.2 * jax.random.normal(k3, (Cout, Cout, KSIZE), jnp.float32)
        gamma = 1.0 + 0.1 * jax.random.normal(k4, (Cout,), jnp.float32)
        beta = 0.1 * jax.random.normal(k5, (Cout,), jnp.float32)

        out, res = jax.jit(basic_block_forward)(x, w1, w2, gamma, beta)
        out = jax.block_until_ready(out)
        res = jax.block_until_ready(res)

        L2 = (L - 1) // 2 + 1
        out_ref, res_ref = _reference(x, w1, w2, gamma, beta)
        assert out.shape == (N, Cout, L2), (out.shape, (N, Cout, L2))
        assert res.shape == (N, Cout, 1), res.shape
        err_o = float(jnp.max(jnp.abs(out - out_ref)))
        err_r = float(jnp.max(jnp.abs(res - res_ref)))
        assert jnp.allclose(out, out_ref, atol=2e-2, rtol=2e-2), (N, Cin, Cout, L, err_o)
        assert jnp.allclose(res, res_ref, atol=2e-2, rtol=2e-2), (N, Cin, Cout, L, err_r)

    kA, kB, kC = jax.random.split(key, 3)
    run_case(kA, N=2, Cin=4, Cout=8, L=16)   # even L, NCL fast path, 2 grid tiles
    run_case(kB, N=4, Cin=3, Cout=5, L=15)   # odd L (right-tap padding), batch tile 2, ragged channels
    run_case(kC, N=2, Cin=4, Cout=8, L=2)    # L2 == 1 edge case (conv2 right-tap fix)
    print("KERNEL_OK")
</pallas_src>

<mosaic_0001>
module attributes {stable_mosaic.version = 11 : i64} {
  func.func @bn_relu_pool_kernel(%arg0: i32, %arg1: memref<1x8x128xbf16, #tpu.memory_space<vmem>>, %arg2: memref<1x128xf32, #tpu.memory_space<vmem>>, %arg3: memref<1x128xf32, #tpu.memory_space<vmem>>, %arg4: memref<1x128x8xf32, #tpu.memory_space<vmem>>, %arg5: memref<1x128x1xf32, #tpu.memory_space<vmem>>) attributes {dimension_semantics = [#tpu.dimension_semantics<parallel>], iteration_bounds = array<i64: 2>, scalar_prefetch = 0 : i64, scratch_operands = 0 : i64, tpu.core_type = #tpu.core_type<tc>, window_params = [{transform_indices = @transform_0, window_bounds = array<i64: 1, 8, 128>}, {pipeline_mode = #tpu.pipeline_mode<synchronous>, transform_indices = @transform_1, window_bounds = array<i64: 1, 128>}, {pipeline_mode = #tpu.pipeline_mode<synchronous>, transform_indices = @transform_2, window_bounds = array<i64: 1, 128>}, {transform_indices = @transform_3, window_bounds = array<i64: 1, 128, 8>}, {transform_indices = @transform_4, window_bounds = array<i64: 1, 128, 1>}]} {
    %c0 = arith.constant 0 : index
    %c0_0 = arith.constant 0 : index
    %0 = vector.load %arg2[%c0, %c0_0] : memref<1x128xf32, #tpu.memory_space<vmem>>, vector<1x128xf32>
    %c0_1 = arith.constant 0 : index
    %c0_2 = arith.constant 0 : index
    %1 = vector.load %arg3[%c0_1, %c0_2] : memref<1x128xf32, #tpu.memory_space<vmem>>, vector<1x128xf32>
    %c0_3 = arith.constant 0 : index
    %c0_4 = arith.constant 0 : index
    %c0_5 = arith.constant 0 : index
    %2 = vector.load %arg1[%c0_3, %c0_4, %c0_5] : memref<1x8x128xbf16, #tpu.memory_space<vmem>>, vector<1x8x128xbf16>
    %3 = vector.shape_cast %2 : vector<1x8x128xbf16> to vector<8x128xbf16>
    %4 = arith.extf %3 : vector<8x128xbf16> to vector<8x128xf32>
    %5 = vector.broadcast %0 : vector<1x128xf32> to vector<8x128xf32>
    %6 = arith.mulf %4, %5 : vector<8x128xf32>
    %7 = vector.broadcast %1 : vector<1x128xf32> to vector<8x128xf32>
    %8 = arith.addf %6, %7 : vector<8x128xf32>
    %cst = arith.constant 0.000000e+00 : f32
    %9 = vector.broadcast %cst : f32 to vector<8x128xf32>
    %10 = arith.maximumf %8, %9 : vector<8x128xf32>
    %11 = tpu.transpose %10, [1, 0] : vector<8x128xf32> -> vector<128x8xf32>
    %c0_6 = arith.constant 0 : index
    %c0_7 = arith.constant 0 : index
    %c0_8 = arith.constant 0 : index
    %12 = vector.load %arg4[%c0_6, %c0_7, %c0_8] : memref<1x128x8xf32, #tpu.memory_space<vmem>>, vector<1x128x8xf32>
    %13 = vector.shape_cast %12 : vector<1x128x8xf32> to vector<128x8xf32>
    %14 = vector.shape_cast %11 : vector<128x8xf32> to vector<1x128x8xf32>
    tpu.vector_store %arg4[%c0_6, %c0_7, %c0_8], %14 {strides = array<i32>} : memref<1x128x8xf32, #tpu.memory_space<vmem>>, vector<1x128x8xf32>,
    %cst_9 = arith.constant dense<0.000000e+00> : vector<128xf32>
    %15 = vector.multi_reduction <add>, %11, %cst_9 [1] : vector<128x8xf32> to vector<128xf32>
    %16 = vector.shape_cast %15 : vector<128xf32> to vector<128x1xf32>
    %cst_10 = arith.constant 8.000000e+00 : f32
    %17 = vector.broadcast %cst_10 : f32 to vector<128x1xf32>
    %18 = arith.divf %16, %17 : vector<128x1xf32>
    %c0_11 = arith.constant 0 : index
    %c0_12 = arith.constant 0 : index
    %c0_13 = arith.constant 0 : index
    %19 = vector.load %arg5[%c0_11, %c0_12, %c0_13] : memref<1x128x1xf32, #tpu.memory_space<vmem>>, vector<1x128x1xf32>
    %20 = vector.shape_cast %19 : vector<1x128x1xf32> to vector<128x1xf32>
    %21 = vector.shape_cast %18 : vector<128x1xf32> to vector<1x128x1xf32>
    tpu.vector_store %arg5[%c0_11, %c0_12, %c0_13], %21 {strides = array<i32>} : memref<1x128x1xf32, #tpu.memory_space<vmem>>, vector<1x128x1xf32>,
    return
  }
  func.func @transform_0(%arg0: i32) -> (i32, i32, i32) {
    %c0_i32 = arith.constant 0 : i32
    %c0_i32_0 = arith.constant 0 : i32
    %c0_i32_1 = arith.constant 0 : i32
    return %arg0, %c0_i32, %c0_i32_0 : i32, i32, i32
  }
  func.func @transform_1(%arg0: i32) -> (i32, i32) {
    %c0_i32 = arith.constant 0 : i32
    %c0_i32_0 = arith.constant 0 : i32
    %c0_i32_1 = arith.constant 0 : i32
    return %c0_i32, %c0_i32_0 : i32, i32
  }
  func.func @transform_2(%arg0: i32) -> (i32, i32) {
    %c0_i32 = arith.constant 0 : i32
    %c0_i32_0 = arith.constant 0 : i32
    %c0_i32_1 = arith.constant 0 : i32
    return %c0_i32, %c0_i32_0 : i32, i32
  }
  func.func @transform_3(%arg0: i32) -> (i32, i32, i32) {
    %c0_i32 = arith.constant 0 : i32
    %c0_i32_0 = arith.constant 0 : i32
    %c0_i32_1 = arith.constant 0 : i32
    return %arg0, %c0_i32, %c0_i32_0 : i32, i32, i32
  }
  func.func @transform_4(%arg0: i32) -> (i32, i32, i32) {
    %c0_i32 = arith.constant 0 : i32
    %c0_i32_0 = arith.constant 0 : i32
    %c0_i32_1 = arith.constant 0 : i32
    return %arg0, %c0_i32, %c0_i32_0 : i32, i32, i32
  }
}

module attributes {stable_mosaic.version = 11 : i64} {
  func.func @conv_stats_kernel(%arg0: i32, %arg1: memref<1x16x128xbf16, #tpu.memory_space<vmem>>, %arg2: memref<384x128xbf16, #tpu.memory_space<vmem>>, %arg3: memref<384x128xbf16, #tpu.memory_space<vmem>>, %arg4: memref<1x8x128xbf16, #tpu.memory_space<vmem>>, %arg5: memref<1x1x128xf32, #tpu.memory_space<vmem>>, %arg6: memref<1x1x128xf32, #tpu.memory_space<vmem>>, %arg7: memref<1x16x384xbf16, #tpu.memory_space<vmem>>, %arg8: memref<1x16x128xf32, #tpu.memory_space<vmem>>, %arg9: memref<1x8x384xbf16, #tpu.memory_space<vmem>>) attributes {dimension_semantics = [#tpu.dimension_semantics<parallel>], iteration_bounds = array<i64: 2>, scalar_prefetch = 0 : i64, scratch_operands = 3 : i64, tpu.core_type = #tpu.core_type<tc>, window_params = [{transform_indices = @transform_0, window_bounds = array<i64: 1, 16, 128>}, {pipeline_mode = #tpu.pipeline_mode<synchronous>, transform_indices = @transform_1, window_bounds = array<i64: 384, 128>}, {pipeline_mode = #tpu.pipeline_mode<synchronous>, transform_indices = @transform_2, window_bounds = array<i64: 384, 128>}, {transform_indices = @transform_3, window_bounds = array<i64: 1, 8, 128>}, {transform_indices = @transform_4, window_bounds = array<i64: 1, 1, 128>}, {transform_indices = @transform_5, window_bounds = array<i64: 1, 1, 128>}]} {
    %c0 = arith.constant 0 : index
    %c0_0 = arith.constant 0 : index
    %c0_1 = arith.constant 0 : index
    %0 = vector.load %arg1[%c0, %c0_0, %c0_1] : memref<1x16x128xbf16, #tpu.memory_space<vmem>>, vector<1x16x128xbf16>
    %c0_2 = arith.constant 0 : index
    %c0_3 = arith.constant 0 : index
    %c128 = arith.constant 128 : index
    %1 = vector.load %arg7[%c0_2, %c0_3, %c128] : memref<1x16x384xbf16, #tpu.memory_space<vmem>>, vector<1x16x128xbf16>
    tpu.vector_store %arg7[%c0_2, %c0_3, %c128], %0 {strides = array<i32>} : memref<1x16x384xbf16, #tpu.memory_space<vmem>>, vector<1x16x128xbf16>,
    %cst = arith.constant 0.000000e+00 : bf16
    %2 = vector.broadcast %cst : bf16 to vector<1x1x128xbf16>
    %c0_4 = arith.constant 0 : index
    %c0_5 = arith.constant 0 : index
    %c0_6 = arith.constant 0 : index
    %3 = vector.load %arg7[%c0_4, %c0_5, %c0_6] : memref<1x16x384xbf16, #tpu.memory_space<vmem>>, vector<1x1x128xbf16>
    tpu.vector_store %arg7[%c0_4, %c0_5, %c0_6], %2 {strides = array<i32>} : memref<1x16x384xbf16, #tpu.memory_space<vmem>>, vector<1x1x128xbf16>,
    %4 = vector.extract_strided_slice %0 {offsets = [0, 0, 0], sizes = [1, 15, 128], strides = [1, 1, 1]} : vector<1x16x128xbf16> to vector<1x15x128xbf16>
    %c0_7 = arith.constant 0 : index
    %c1 = arith.constant 1 : index
    %c0_8 = arith.constant 0 : index
    %5 = vector.load %arg7[%c0_7, %c1, %c0_8] : memref<1x16x384xbf16, #tpu.memory_space<vmem>>, vector<1x15x128xbf16>
    tpu.vector_store %arg7[%c0_7, %c1, %c0_8], %4 {strides = array<i32>} : memref<1x16x384xbf16, #tpu.memory_space<vmem>>, vector<1x15x128xbf16>,
    %6 = vector.extract_strided_slice %0 {offsets = [0, 1, 0], sizes = [1, 15, 128], strides = [1, 1, 1]} : vector<1x16x128xbf16> to vector<1x15x128xbf16>
    %c0_9 = arith.constant 0 : index
    %c0_10 = arith.constant 0 : index
    %c256 = arith.constant 256 : index
    %7 = vector.load %arg7[%c0_9, %c0_10, %c256] : memref<1x16x384xbf16, #tpu.memory_space<vmem>>, vector<1x15x128xbf16>
    tpu.vector_store %arg7[%c0_9, %c0_10, %c256], %6 {strides = array<i32>} : memref<1x16x384xbf16, #tpu.memory_space<vmem>>, vector<1x15x128xbf16>,
    %cst_11 = arith.constant 0.000000e+00 : bf16
    %8 = vector.broadcast %cst_11 : bf16 to vector<1x1x128xbf16>
    %c0_12 = arith.constant 0 : index
    %c15 = arith.constant 15 : index
    %c256_13 = arith.constant 256 : index
    %9 = vector.load %arg7[%c0_12, %c15, %c256_13] : memref<1x16x384xbf16, #tpu.memory_space<vmem>>, vector<1x1x128xbf16>
    tpu.vector_store %arg7[%c0_12, %c15, %c256_13], %8 {strides = array<i32>} : memref<1x16x384xbf16, #tpu.memory_space<vmem>>, vector<1x1x128xbf16>,
    %c0_14 = arith.constant 0 : index
    %c0_15 = arith.constant 0 : index
    %c0_16 = arith.constant 0 : index
    %10 = vector.load %arg7[%c0_14, %c0_15, %c0_16] : memref<1x16x384xbf16, #tpu.memory_space<vmem>>, vector<1x16x384xbf16>
    %11 = vector.shape_cast %10 : vector<1x16x384xbf16> to vector<16x384xbf16>
    %c0_17 = arith.constant 0 : index
    %c0_18 = arith.constant 0 : index
    %12 = vector.load %arg2[%c0_17, %c0_18] : memref<384x128xbf16, #tpu.memory_space<vmem>>, vector<384x128xbf16>
    %cst_19 = arith.constant dense<0.000000e+00> : vector<16x128xf32>
    %13 = tpu.matmul %11, %12, %cst_19 {dimension_numbers = #tpu.dot_dimension_numbers<[1], [0], [0], [1], [0, 0, 1, 1], [], []>} : vector<16x384xbf16>, vector<384x128xbf16>, vector<16x128xf32> -> vector<16x128xf32>
    %14 = vector.shape_cast %13 : vector<16x128xf32> to vector<1x16x128xf32>
    %c0_20 = arith.constant 0 : index
    %c0_21 = arith.constant 0 : index
    %c0_22 = arith.constant 0 : index
    %15 = vector.load %arg8[%c0_20, %c0_21, %c0_22] : memref<1x16x128xf32, #tpu.memory_space<vmem>>, vector<1x16x128xf32>
    tpu.vector_store %arg8[%c0_20, %c0_21, %c0_22], %14 {strides = array<i32>} : memref<1x16x128xf32, #tpu.memory_space<vmem>>, vector<1x16x128xf32>,
    %c0_23 = arith.constant 0 : index
    %c0_24 = arith.constant 0 : index
    %c0_25 = arith.constant 0 : index
    %16 = tpu.strided_load %arg8[%c0_23, %c0_24, %c0_25] {strides = array<i32: 1, 2, 1>} : memref<1x16x128xf32, #tpu.memory_space<vmem>>, vector<1x8x128xf32>
    %c0_26 = arith.constant 0 : index
    %c1_27 = arith.constant 1 : index
    %c0_28 = arith.constant 0 : index
    %17 = tpu.strided_load %arg8[%c0_26, %c1_27, %c0_28] {strides = array<i32: 1, 2, 1>} : memref<1x16x128xf32, #tpu.memory_space<vmem>>, vector<1x8x128xf32>
    %18 = arith.truncf %16 : vector<1x8x128xf32> to vector<1x8x128xbf16>
    %c0_29 = arith.constant 0 : index
    %c0_30 = arith.constant 0 : index
    %c128_31 = arith.constant 128 : index
    %19 = vector.load %arg9[%c0_29, %c0_30, %c128_31] : memref<1x8x384xbf16, #tpu.memory_space<vmem>>, vector<1x8x128xbf16>
    tpu.vector_store %arg9[%c0_29, %c0_30, %c128_31], %18 {strides = array<i32>} : memref<1x8x384xbf16, #tpu.memory_space<vmem>>, vector<1x8x128xbf16>,
    %cst_32 = arith.constant 0.000000e+00 : bf16
    %20 = vector.broadcast %cst_32 : bf16 to vector<1x1x128xbf16>
    %c0_33 = arith.constant 0 : index
    %c0_34 = arith.constant 0 : index
    %c0_35 = arith.constant 0 : index
    %21 = vector.load %arg9[%c0_33, %c0_34, %c0_35] : memref<1x8x384xbf16, #tpu.memory_space<vmem>>, vector<1x1x128xbf16>
    tpu.vector_store %arg9[%c0_33, %c0_34, %c0_35], %20 {strides = array<i32>} : memref<1x8x384xbf16, #tpu.memory_space<vmem>>, vector<1x1x128xbf16>,
    %22 = vector.extract_strided_slice %17 {offsets = [0, 0, 0], sizes = [1, 7, 128], strides = [1, 1, 1]} : vector<1x8x128xf32> to vector<1x7x128xf32>
    %23 = arith.truncf %22 : vector<1x7x128xf32> to vector<1x7x128xbf16>
    %c0_36 = arith.constant 0 : index
    %c1_37 = arith.constant 1 : index
    %c0_38 = arith.constant 0 : index
    %24 = vector.load %arg9[%c0_36, %c1_37, %c0_38] : memref<1x8x384xbf16, #tpu.memory_space<vmem>>, vector<1x7x128xbf16>
    tpu.vector_store %arg9[%c0_36, %c1_37, %c0_38], %23 {strides = array<i32>} : memref<1x8x384xbf16, #tpu.memory_space<vmem>>, vector<1x7x128xbf16>,
    %25 = arith.truncf %17 : vector<1x8x128xf32> to vector<1x8x128xbf16>
    %c0_39 = arith.constant 0 : index
    %c0_40 = arith.constant 0 : index
    %c256_41 = arith.constant 256 : index
    %26 = vector.load %arg9[%c0_39, %c0_40, %c256_41] : memref<1x8x384xbf16, #tpu.memory_space<vmem>>, vector<1x8x128xbf16>
    tpu.vector_store %arg9[%c0_39, %c0_40, %c256_41], %25 {strides = array<i32>} : memref<1x8x384xbf16, #tpu.memory_space<vmem>>, vector<1x8x128xbf16>,
    %c0_42 = arith.constant 0 : index
    %c0_43 = arith.constant 0 : index
    %c0_44 = arith.constant 0 : index
    %27 = vector.load %arg9[%c0_42, %c0_43, %c0_44] : memref<1x8x384xbf16, #tpu.memory_space<vmem>>, vector<1x8x384xbf16>
    %28 = vector.shape_cast %27 : vector<1x8x384xbf16> to vector<8x384xbf16>
    %c0_45 = arith.constant 0 : index
    %c0_46 = arith.constant 0 : index
    %29 = vector.load %arg3[%c0_45, %c0_46] : memref<384x128xbf16, #tpu.memory_space<vmem>>, vector<384x128xbf16>
    %cst_47 = arith.constant dense<0.000000e+00> : vector<8x128xf32>
    %30 = tpu.matmul %28, %29, %cst_47 {dimension_numbers = #tpu.dot_dimension_numbers<[1], [0], [0], [1], [0, 0, 1, 1], [], []>} : vector<8x384xbf16>, vector<384x128xbf16>, vector<8x128xf32> -> vector<8x128xf32>
    %31 = vector.shape_cast %30 : vector<8x128xf32> to vector<1x8x128xf32>
    %cst_48 = arith.constant dense<0.000000e+00> : vector<128xf32>
    %32 = vector.multi_reduction <add>, %31, %cst_48 [0, 1] : vector<1x8x128xf32> to vector<128xf32>
    %33 = vector.shape_cast %32 : vector<128xf32> to vector<1x1x128xf32>
    %c0_49 = arith.constant 0 : index
    %c0_50 = arith.constant 0 : index
    %c0_51 = arith.constant 0 : index
    %34 = vector.load %arg5[%c0_49, %c0_50, %c0_51] : memref<1x1x128xf32, #tpu.memory_space<vmem>>, vector<1x1x128xf32>
    tpu.vector_store %arg5[%c0_49, %c0_50, %c0_51], %33 {strides = array<i32>} : memref<1x1x128xf32, #tpu.memory_space<vmem>>, vector<1x1x128xf32>,
    %35 = arith.mulf %31, %31 : vector<1x8x128xf32>
    %cst_52 = arith.constant dense<0.000000e+00> : vector<128xf32>
    %36 = vector.multi_reduction <add>, %35, %cst_52 [0, 1] : vector<1x8x128xf32> to vector<128xf32>
    %37 = vector.shape_cast %36 : vector<128xf32> to vector<1x1x128xf32>
    %c0_53 = arith.constant 0 : index
    %c0_54 = arith.constant 0 : index
    %c0_55 = arith.constant 0 : index
    %38 = vector.load %arg6[%c0_53, %c0_54, %c0_55] : memref<1x1x128xf32, #tpu.memory_space<vmem>>, vector<1x1x128xf32>
    tpu.vector_store %arg6[%c0_53, %c0_54, %c0_55], %37 {strides = array<i32>} : memref<1x1x128xf32, #tpu.memory_space<vmem>>, vector<1x1x128xf32>,
    %39 = arith.truncf %31 : vector<1x8x128xf32> to vector<1x8x128xbf16>
    %c0_56 = arith.constant 0 : index
    %c0_57 = arith.constant 0 : index
    %c0_58 = arith.constant 0 : index
    %40 = vector.load %arg4[%c0_56, %c0_57, %c0_58] : memref<1x8x128xbf16, #tpu.memory_space<vmem>>, vector<1x8x128xbf16>
    tpu.vector_store %arg4[%c0_56, %c0_57, %c0_58], %39 {strides = array<i32>} : memref<1x8x128xbf16, #tpu.memory_space<vmem>>, vector<1x8x128xbf16>,
    return
  }
  func.func @transform_0(%arg0: i32) -> (i32, i32, i32) {
    %c0_i32 = arith.constant 0 : i32
    %c0_i32_0 = arith.constant 0 : i32
    %c0_i32_1 = arith.constant 0 : i32
    return %arg0, %c0_i32, %c0_i32_0 : i32, i32, i32
  }
  func.func @transform_1(%arg0: i32) -> (i32, i32) {
    %c0_i32 = arith.constant 0 : i32
    %c0_i32_0 = arith.constant 0 : i32
    %c0_i32_1 = arith.constant 0 : i32
    return %c0_i32, %c0_i32_0 : i32, i32
  }
  func.func @transform_2(%arg0: i32) -> (i32, i32) {
    %c0_i32 = arith.constant 0 : i32
    %c0_i32_0 = arith.constant 0 : i32
    %c0_i32_1 = arith.constant 0 : i32
    return %c0_i32, %c0_i32_0 : i32, i32
  }
  func.func @transform_3(%arg0: i32) -> (i32, i32, i32) {
    %c0_i32 = arith.constant 0 : i32
    %c0_i32_0 = arith.constant 0 : i32
    %c0_i32_1 = arith.constant 0 : i32
    return %arg0, %c0_i32, %c0_i32_0 : i32, i32, i32
  }
  func.func @transform_4(%arg0: i32) -> (i32, i32, i32) {
    %c0_i32 = arith.constant 0 : i32
    %c0_i32_0 = arith.constant 0 : i32
    %c0_i32_1 = arith.constant 0 : i32
    return %arg0, %c0_i32, %c0_i32_0 : i32, i32, i32
  }
  func.func @transform_5(%arg0: i32) -> (i32, i32, i32) {
    %c0_i32 = arith.constant 0 : i32
    %c0_i32_0 = arith.constant 0 : i32
    %c0_i32_1 = arith.constant 0 : i32
    return %arg0, %c0_i32, %c0_i32_0 : i32, i32, i32
  }
}

</mosaic_0001>

<llo_original>
// kernel: basic_block_forward.3
$region0: #{basic_block_forward.3}
  #allocation0 [shape = 'u32[]', space=smem, size = 0x4, offset = 0x4, fixed_abs, tag = 'smem constant byte address 0x4 - core index']
  #allocation1 [shape = 'u32[72,128]{1,0:T(1,128)}', space=vmem, size = 0x9000, scoped, tag = 'internal scratch']
  %s0 = inlined_call_operand.vmem [shape: bf16[2,8,128], index: 0, kind: input, shape index: {}]
  %s1 = inlined_call_operand.vmem [shape: f32[1,128], index: 1, kind: input, shape index: {}]
  %s2 = inlined_call_operand.vmem [shape: f32[1,128], index: 2, kind: input, shape index: {}]
  %s3 = inlined_call_operand.vmem [shape: f32[2,128,8], index: 3, kind: output, shape index: {0}]
  %s4 = inlined_call_operand.vmem [shape: f32[2,128,1], index: 4, kind: output, shape index: {1}]
  %5 = xla_tuple %s3, %s4
  %s6 = sld [smem:[#allocation0]]
  $region53: #{basic_block_forward.3} parent=0
    _
  %s8 = ssub.s32 1, %s6
  %s9 = scalar_select 0, %s8, %s6
  loop: start=0, step=1, limit=4
  $region2: #{basic_block_forward.3} parent=0 // loop_pre_header
    _
  $region3: #{basic_block_forward.3} parent=0 // loop_header
    %s11 = sphi 0, %s15
    %p12 = scmp.ge.s32.totalorder %s11, 4
    %s21 = sphi 0, %s23
    %s24 = sphi 0, %s21
    %s25 = sphi 0, %s24
    %s41 = sphi 0, %s25
    %s45 = sphi 0, %s45
    %s47 = sphi 0, %s45
    %s48 = sphi 0, %s47
    %s62 = sphi 0, %s48
    %s66 = sphi 0, %s66
    %s68 = sphi 0, %s66
    %s69 = sphi 0, %s68
    %s83 = sphi 0, %s69
    %s89 = sphi 0, %s91
    %s92 = sphi 0, %s89
    %s93 = sphi 0, %s92
    %s109 = sphi 0, %s93
    %s115 = sphi 0, %s117
    %s118 = sphi 0, %s115
    %s119 = sphi 0, %s118
    %s135 = sphi 0, %s119
  $region4: #{basic_block_forward.3} parent=0 // loop_header_branch
    %14 = sbr.rel (%p12) target = $region8
  $region5: #{basic_block_forward.3} parent=0 // loop_body
    %s16 = ssub.s32 %s11, 1
    %s17 = ssub.s32 %s11, 2
    %s18 = sadd.s32 %s11, 1
    %s19 = ssub.s32 %s11, %s18
    %p20 = scmp.eq.s32.totalorder %s19, 0
    %s22 = sadd.s32 %s21, 1
    %s23 = scalar_select %p20, %s21, %s22
    %p26 = pneg %p20
    %p27 = scmp.eq.s32.totalorder %s11, 1
    %p28 = por %p26, %p27
    %p29 = scmp.ne.s32.totalorder %s21, %s24
    %p30 = scmp.eq.s32.totalorder %s11, 0
    %p31 = por %p29, %p30
    %p32 = scmp.ne.s32.totalorder %s21, %s24
    %p33 = scmp.eq.s32.totalorder %s16, 1
    %p34 = por %p32, %p33
    %p35 = scmp.ne.s32.totalorder %s24, %s25
    %p36 = scmp.eq.s32.totalorder %s16, 0
    %p37 = por %p35, %p36
    %p38 = scmp.ne.s32.totalorder %s24, %s25
    %p39 = scmp.eq.s32.totalorder %s17, 1
    %p40 = por %p38, %p39
    %p42 = scmp.ne.s32.totalorder %s25, %s41
    %p43 = scmp.eq.s32.totalorder %s17, 0
    %p44 = por %p42, %p43
    %s46 = sadd.s32 %s45, 1
    %p49 = scmp.eq.s32.totalorder %s11, 1
    %p50 = scmp.ne.s32.totalorder %s45, %s47
    %p51 = scmp.eq.s32.totalorder %s11, 0
    %p52 = por %p50, %p51
    %p53 = scmp.ne.s32.totalorder %s45, %s47
    %p54 = scmp.eq.s32.totalorder %s16, 1
    %p55 = por %p53, %p54
    %p56 = scmp.ne.s32.totalorder %s47, %s48
    %p57 = scmp.eq.s32.totalorder %s16, 0
    %p58 = por %p56, %p57
    %p59 = scmp.ne.s32.totalorder %s47, %s48
    %p60 = scmp.eq.s32.totalorder %s17, 1
    %p61 = por %p59, %p60
    %p63 = scmp.ne.s32.totalorder %s48, %s62
    %p64 = scmp.eq.s32.totalorder %s17, 0
    %p65 = por %p63, %p64
    %s67 = sadd.s32 %s66, 1
    %p70 = scmp.eq.s32.totalorder %s11, 1
    %p71 = scmp.ne.s32.totalorder %s66, %s68
    %p72 = scmp.eq.s32.totalorder %s11, 0
    %p73 = por %p71, %p72
    %p74 = scmp.ne.s32.totalorder %s66, %s68
    %p75 = scmp.eq.s32.totalorder %s16, 1
    %p76 = por %p74, %p75
    %p77 = scmp.ne.s32.totalorder %s68, %s69
    %p78 = scmp.eq.s32.totalorder %s16, 0
    %p79 = por %p77, %p78
    %p80 = scmp.ne.s32.totalorder %s68, %s69
    %p81 = scmp.eq.s32.totalorder %s17, 1
    %p82 = por %p80, %p81
    %p84 = scmp.ne.s32.totalorder %s69, %s83
    %p85 = scmp.eq.s32.totalorder %s17, 0
    %p86 = por %p84, %p85
    %s87 = ssub.s32 %s11, %s18
    %p88 = scmp.eq.s32.totalorder %s87, 0
    %s90 = sadd.s32 %s89, 1
    %s91 = scalar_select %p88, %s89, %s90
    %p94 = pneg %p88
    %p95 = scmp.eq.s32.totalorder %s11, 1
    %p96 = por %p94, %p95
    %p97 = scmp.ne.s32.totalorder %s89, %s92
    %p98 = scmp.eq.s32.totalorder %s11, 0
    %p99 = por %p97, %p98
    %p100 = scmp.ne.s32.totalorder %s89, %s92
    %p101 = scmp.eq.s32.totalorder %s16, 1
    %p102 = por %p100, %p101
    %p103 = scmp.ne.s32.totalorder %s92, %s93
    %p104 = scmp.eq.s32.totalorder %s16, 0
    %p105 = por %p103, %p104
    %p106 = scmp.ne.s32.totalorder %s92, %s93
    %p107 = scmp.eq.s32.totalorder %s17, 1
    %p108 = por %p106, %p107
    %p110 = scmp.ne.s32.totalorder %s93, %s109
    %p111 = scmp.eq.s32.totalorder %s17, 0
    %p112 = por %p110, %p111
    %s113 = ssub.s32 %s11, %s18
    %p114 = scmp.eq.s32.totalorder %s113, 0
    %s116 = sadd.s32 %s115, 1
    %s117 = scalar_select %p114, %s115, %s116
    %p120 = pneg %p114
    %p121 = scmp.eq.s32.totalorder %s11, 1
    %p122 = por %p120, %p121
    %p123 = scmp.ne.s32.totalorder %s115, %s118
    %p124 = scmp.eq.s32.totalorder %s11, 0
    %p125 = por %p123, %p124
    %p126 = scmp.ne.s32.totalorder %s115, %s118
    %p127 = scmp.eq.s32.totalorder %s16, 1
    %p128 = por %p126, %p127
    %p129 = scmp.ne.s32.totalorder %s118, %s119
    %p130 = scmp.eq.s32.totalorder %s16, 0
    %p131 = por %p129, %p130
    %p132 = scmp.ne.s32.totalorder %s118, %s119
    %p133 = scmp.eq.s32.totalorder %s17, 1
    %p134 = por %p132, %p133
    %p136 = scmp.ne.s32.totalorder %s119, %s135
    %p137 = scmp.eq.s32.totalorder %s17, 0
    %p138 = por %p136, %p137
    %p139 = scmp.le.s32.totalorder 1, %s11
    %p140 = scmp.lt.s32.totalorder %s11, 3
    %p141 = pnand %p139, %p140
    %p142 = pneg %p141
    // Predicated region
    $region9: #{basic_block_forward.3} parent=5 // pred_check
      _
    $region10: #{basic_block_forward.3} parent=5 // pred_check_branch
      %144 = sbr.rel (%p141) target = $region12
    $region11: #{basic_block_forward.3} parent=5 // pred_region
      %s145 = ssub.s32 %s11, 1
      // Predicated region
      $region13: #{basic_block_forward.3} parent=11 // pred_check
        %p146 = pneg %p58
      $region14: #{basic_block_forward.3} parent=11 // pred_check_branch
        %148 = sbr.rel (%p146) target = $region16
      $region15: #{basic_block_forward.3} parent=11 // pred_region
        _
      $region16: #{basic_block_forward.3} parent=11 // pred_fallthru
        _
      // Predicated region
      $region17: #{basic_block_forward.3} parent=11 // pred_check
        %p149 = pneg %p79
      $region18: #{basic_block_forward.3} parent=11 // pred_check_branch
        %151 = sbr.rel (%p149) target = $region20
      $region19: #{basic_block_forward.3} parent=11 // pred_region
        _
      $region20: #{basic_block_forward.3} parent=11 // pred_fallthru
        _
    $region12: #{basic_block_forward.3} parent=5 // pred_fallthru
      _
    %p152 = scmp.lt.s32.totalorder %s11, 2
    // Predicated region
    $region21: #{basic_block_forward.3} parent=5 // pred_check
      %p153 = pneg %p152
    $region22: #{basic_block_forward.3} parent=5 // pred_check_branch
      %155 = sbr.rel (%p153) target = $region24
    $region23: #{basic_block_forward.3} parent=5 // pred_region
      // Predicated region
      $region25: #{basic_block_forward.3} parent=23 // pred_check
        %p156 = pneg %p31
      $region26: #{basic_block_forward.3} parent=23 // pred_check_branch
        %158 = sbr.rel (%p156) target = $region28
      $region27: #{basic_block_forward.3} parent=23 // pred_region
        %p159 = scmp.lt.s32.totalorder %s11, 1
        %s160 = scalar_select %p159, %s11, 1
        %s161 = smul.addr %s160, 4
        %s162 = scalar_lea.vmem %s0, %s161
      $region28: #{basic_block_forward.3} parent=23 // pred_fallthru
        _
    $region24: #{basic_block_forward.3} parent=5 // pred_fallthru
      _
    %p163 = scmp.le.s32.totalorder 1, %s11
    %p164 = scmp.lt.s32.totalorder %s11, 3
    %p165 = pnand %p163, %p164
    %p166 = pneg %p165
    // Predicated region
    $region29: #{basic_block_forward.3} parent=5 // pred_check
      _
    $region30: #{basic_block_forward.3} parent=5 // pred_check_branch
      %168 = sbr.rel (%p165) target = $region32
    $region31: #{basic_block_forward.3} parent=5 // pred_region
      %s169 = ssub.s32 %s11, 1
      %p170 = scmp.lt.s32.totalorder %s16, 1
      %s171 = scalar_select %p170, %s16, 1
      %s172 = smul.addr %s171, 4
      %s173 = scalar_lea.vmem %s0, %s172
      %p174 = pneg %p37
      %p175 = pneg %p34
      %p176 = pneg %p58
      %p177 = pneg %p55
      %p178 = pneg %p79
      %p179 = pneg %p76
      %p180 = pneg %p105
      %p181 = pneg %p102
      %p182 = scmp.lt.s32.totalorder %s16, 1
      %s183 = scalar_select %p182, %s16, 1
      %s184 = smul.addr %s183, 16
      %s185 = smul.addr %s184, 8
      %s186 = scalar_lea.vmem %s3, %s185
      %p187 = pneg %p131
      %p188 = pneg %p128
      %p189 = scmp.lt.s32.totalorder %s16, 1
      %s190 = scalar_select %p189, %s16, 1
      %s191 = smul.addr %s190, 16
      %s192 = smul.addr %s191, 8
      %s193 = scalar_lea.vmem %s4, %s192
      %p194 = scmp.lt.s32.totalorder %s16, 1
      %s195 = scalar_select %p194, %s16, 1
      %s196 = smul.addr %s195, 4
      %s197 = scalar_lea.vmem %s0, %s196
      %p198 = scmp.lt.s32.totalorder %s16, 1
      %s199 = scalar_select %p198, %s16, 1
      %s200 = smul.addr %s199, 16
      %s201 = smul.addr %s200, 8
      %s202 = scalar_lea.vmem %s3, %s201
      %p203 = scmp.lt.s32.totalorder %s16, 1
      %s204 = scalar_select %p203, %s16, 1
      %s205 = smul.addr %s204, 16
      %s206 = smul.addr %s205, 8
      %s207 = scalar_lea.vmem %s4, %s206
      %v208 = vld [vmem:[%s1] sm:$0x1]
      %v209 = vld [vmem:[%s2] sm:$0x1]
      %v210 = vld [vmem:[%s197] sm:$0xf]
      %v211 = vunpack.c.l.bf16 %v210
      %v213 = vperm.slane %v208, 0
      %v215 = vmul.f32 %v211, %v213
      %v217 = vperm.slane %v209, 0
      %v219 = vadd.f32 %v215, %v217
      %v220 = vmax.f32 %v219, 0.0
      %221 = vxpose.xlu0.b32.start [1/16] %v220, 128
      %222 = vxpose.xlu0.b32.cont [2/16] 0.0, 128
      %223 = vxpose.xlu0.b32.cont [3/16] 0.0, 128
      %224 = vxpose.xlu0.b32.cont [4/16] 0.0, 128
      %225 = vxpose.xlu0.b32.cont [5/16] 0.0, 128
      %226 = vxpose.xlu0.b32.cont [6/16] 0.0, 128
      %227 = vxpose.xlu0.b32.cont [7/16] 0.0, 128
      %228 = vxpose.xlu0.b32.cont [8/16] 0.0, 128
      %229 = vxpose.xlu0.b32.cont [9/16] 0.0, 128
      %230 = vxpose.xlu0.b32.cont [10/16] 0.0, 128
      %231 = vxpose.xlu0.b32.cont [11/16] 0.0, 128
      %232 = vxpose.xlu0.b32.cont [12/16] 0.0, 128
      %233 = vxpose.xlu0.b32.cont [13/16] 0.0, 128
      %234 = vxpose.xlu0.b32.cont [14/16] 0.0, 128
      %235 = vxpose.xlu0.b32.cont [15/16] 0.0, 128
      %236 = vxpose.xlu0.b32.end [16/16] 0.0, 128
      %v237 = vpop.trf.xlu0
      %v238 = vpop.trf.xlu0
      %v239 = vpop.trf.xlu0
      %v240 = vpop.trf.xlu0
      %v241 = vpop.trf.xlu0
      %v242 = vpop.trf.xlu0
      %v243 = vpop.trf.xlu0
      %v244 = vpop.trf.xlu0
      %v245 = vpop.trf.xlu0
      %v246 = vpop.trf.xlu0
      %v247 = vpop.trf.xlu0
      %v248 = vpop.trf.xlu0
      %v249 = vpop.trf.xlu0
      %v250 = vpop.trf.xlu0
      %v251 = vpop.trf.xlu0
      %v252 = vpop.trf.xlu0
      %vm253 = vcmask 64512
      %254 = vst.msk [vmem:[%s202] sm:$0xff] %vm253, %v237
      %255 = vst.msk [vmem:[%s202 + $0x8] sm:$0xff] %vm253, %v238
      %256 = vst.msk [vmem:[%s202 + $0x10] sm:$0xff] %vm253, %v239
      %257 = vst.msk [vmem:[%s202 + $0x18] sm:$0xff] %vm253, %v240
      %258 = vst.msk [vmem:[%s202 + $0x20] sm:$0xff] %vm253, %v241
      %259 = vst.msk [vmem:[%s202 + $0x28] sm:$0xff] %vm253, %v242
      %260 = vst.msk [vmem:[%s202 + $0x30] sm:$0xff] %vm253, %v243
      %261 = vst.msk [vmem:[%s202 + $0x38] sm:$0xff] %vm253, %v244
      %262 = vst.msk [vmem:[%s202 + $0x40] sm:$0xff] %vm253, %v245
      %263 = vst.msk [vmem:[%s202 + $0x48] sm:$0xff] %vm253, %v246
      %264 = vst.msk [vmem:[%s202 + $0x50] sm:$0xff] %vm253, %v247
      %265 = vst.msk [vmem:[%s202 + $0x58] sm:$0xff] %vm253, %v248
      %266 = vst.msk [vmem:[%s202 + $0x60] sm:$0xff] %vm253, %v249
      %267 = vst.msk [vmem:[%s202 + $0x68] sm:$0xff] %vm253, %v250
      %268 = vst.msk [vmem:[%s202 + $0x70] sm:$0xff] %vm253, %v251
      %269 = vst.msk [vmem:[%s202 + $0x78] sm:$0xff] %vm253, %v252
      %v270 = vsel %vm253, %v237, 0.0
      %271 = vadd.xlane.f32.xlu0 %v270
      %v272 = vpop.xlane.xlu0 %271
      %v273 = vsel %vm253, %v238, 0.0
      %274 = vadd.xlane.f32.xlu0 %v273
      %v275 = vpop.xlane.xlu0 %274
      %v276 = vsel %vm253, %v239, 0.0
      %277 = vadd.xlane.f32.xlu0 %v276
      %v278 = vpop.xlane.xlu0 %277
      %v279 = vsel %vm253, %v240, 0.0
      %280 = vadd.xlane.f32.xlu0 %v279
      %v281 = vpop.xlane.xlu0 %280
      %v282 = vsel %vm253, %v241, 0.0
      %283 = vadd.xlane.f32.xlu0 %v282
      %v284 = vpop.xlane.xlu0 %283
      %v285 = vsel %vm253, %v242, 0.0
      %286 = vadd.xlane.f32.xlu0 %v285
      %v287 = vpop.xlane.xlu0 %286
      %v288 = vsel %vm253, %v243, 0.0
      %289 = vadd.xlane.f32.xlu0 %v288
      %v290 = vpop.xlane.xlu0 %289
      %v291 = vsel %vm253, %v244, 0.0
      %292 = vadd.xlane.f32.xlu0 %v291
      %v293 = vpop.xlane.xlu0 %292
      %v294 = vsel %vm253, %v245, 0.0
      %295 = vadd.xlane.f32.xlu0 %v294
      %v296 = vpop.xlane.xlu0 %295
      %v297 = vsel %vm253, %v246, 0.0
      %298 = vadd.xlane.f32.xlu0 %v297
      %v299 = vpop.xlane.xlu0 %298
      %v300 = vsel %vm253, %v247, 0.0
      %301 = vadd.xlane.f32.xlu0 %v300
      %v302 = vpop.xlane.xlu0 %301
      %v303 = vsel %vm253, %v248, 0.0
      %304 = vadd.xlane.f32.xlu0 %v303
      %v305 = vpop.xlane.xlu0 %304
      %v306 = vsel %vm253, %v249, 0.0
      %307 = vadd.xlane.f32.xlu0 %v306
      %v308 = vpop.xlane.xlu0 %307
      %v309 = vsel %vm253, %v250, 0.0
      %310 = vadd.xlane.f32.xlu0 %v309
      %v311 = vpop.xlane.xlu0 %310
      %v312 = vsel %vm253, %v251, 0.0
      %313 = vadd.xlane.f32.xlu0 %v312
      %v314 = vpop.xlane.xlu0 %313
      %v315 = vsel %vm253, %v252, 0.0
      %316 = vadd.xlane.f32.xlu0 %v315
      %v317 = vpop.xlane.xlu0 %316
      %v318 = vrcp.pop 8.0
      %v319 = vmul.f32 8.0, %v318
      %v320 = vsub.f32 1.0, %v319
      %v321 = vmul.f32 %v318, %v320
      %v322 = vadd.f32 %v318, %v321
      %vm323 = vweird.f32 %v318
      %v324 = vsel %vm323, %v318, %v322
      %v325 = vmul.f32 %v272, %v324
      %v326 = vmul.f32 %v275, %v324
      %v327 = vmul.f32 %v278, %v324
      %v328 = vmul.f32 %v281, %v324
      %v329 = vmul.f32 %v284, %v324
      %v330 = vmul.f32 %v287, %v324
      %v331 = vmul.f32 %v290, %v324
      %v332 = vmul.f32 %v293, %v324
      %v333 = vmul.f32 %v296, %v324
      %v334 = vmul.f32 %v299, %v324
      %v335 = vmul.f32 %v302, %v324
      %v336 = vmul.f32 %v305, %v324
      %v337 = vmul.f32 %v308, %v324
      %v338 = vmul.f32 %v311, %v324
      %v339 = vmul.f32 %v314, %v324
      %v340 = vmul.f32 %v317, %v324
      %vm341 = vcmask 7168
      %342 = vst.msk [vmem:[%s207] sm:$0xff] %vm341, %v325
      %343 = vst.msk [vmem:[%s207 + $0x8] sm:$0xff] %vm341, %v326
      %344 = vst.msk [vmem:[%s207 + $0x10] sm:$0xff] %vm341, %v327
      %345 = vst.msk [vmem:[%s207 + $0x18] sm:$0xff] %vm341, %v328
      %346 = vst.msk [vmem:[%s207 + $0x20] sm:$0xff] %vm341, %v329
      %347 = vst.msk [vmem:[%s207 + $0x28] sm:$0xff] %vm341, %v330
      %348 = vst.msk [vmem:[%s207 + $0x30] sm:$0xff] %vm341, %v331
      %349 = vst.msk [vmem:[%s207 + $0x38] sm:$0xff] %vm341, %v332
      %350 = vst.msk [vmem:[%s207 + $0x40] sm:$0xff] %vm341, %v333
      %351 = vst.msk [vmem:[%s207 + $0x48] sm:$0xff] %vm341, %v334
      %352 = vst.msk [vmem:[%s207 + $0x50] sm:$0xff] %vm341, %v335
      %353 = vst.msk [vmem:[%s207 + $0x58] sm:$0xff] %vm341, %v336
      %354 = vst.msk [vmem:[%s207 + $0x60] sm:$0xff] %vm341, %v337
      %355 = vst.msk [vmem:[%s207 + $0x68] sm:$0xff] %vm341, %v338
      %356 = vst.msk [vmem:[%s207 + $0x70] sm:$0xff] %vm341, %v339
      %357 = vst.msk [vmem:[%s207 + $0x78] sm:$0xff] %vm341, %v340
      %p358 = scmp.lt.s32.totalorder %s16, 1
      %s359 = scalar_select %p358, %s16, 1
      %s360 = smul.addr %s359, 16
      %s361 = smul.addr %s360, 8
      %s362 = scalar_lea.vmem %s3, %s361
      %p363 = scmp.lt.s32.totalorder %s16, 1
      %s364 = scalar_select %p363, %s16, 1
      %s365 = smul.addr %s364, 16
      %s366 = smul.addr %s365, 8
      %s367 = scalar_lea.vmem %s4, %s366
      // Predicated region
      $region33: #{basic_block_forward.3} parent=31 // pred_check
        %p368 = pneg %p102
      $region34: #{basic_block_forward.3} parent=31 // pred_check_branch
        %370 = sbr.rel (%p368) target = $region36
      $region35: #{basic_block_forward.3} parent=31 // pred_region
        _
      $region36: #{basic_block_forward.3} parent=31 // pred_fallthru
        _
      // Predicated region
      $region37: #{basic_block_forward.3} parent=31 // pred_check
        %p371 = pneg %p128
      $region38: #{basic_block_forward.3} parent=31 // pred_check_branch
        %373 = sbr.rel (%p371) target = $region40
      $region39: #{basic_block_forward.3} parent=31 // pred_region
        _
      $region40: #{basic_block_forward.3} parent=31 // pred_fallthru
        _
    $region32: #{basic_block_forward.3} parent=5 // pred_fallthru
      _
    %p374 = scmp.le.s32.totalorder 2, %s11
    // Predicated region
    $region41: #{basic_block_forward.3} parent=5 // pred_check
      %p375 = pneg %p374
    $region42: #{basic_block_forward.3} parent=5 // pred_check_branch
      %377 = sbr.rel (%p375) target = $region44
    $region43: #{basic_block_forward.3} parent=5 // pred_region
      %s378 = ssub.s32 %s11, 2
      // Predicated region
      $region45: #{basic_block_forward.3} parent=43 // pred_check
        %p379 = pneg %p108
      $region46: #{basic_block_forward.3} parent=43 // pred_check_branch
        %381 = sbr.rel (%p379) target = $region48
      $region47: #{basic_block_forward.3} parent=43 // pred_region
        %p382 = scmp.lt.s32.totalorder %s17, 1
        %s383 = scalar_select %p382, %s17, 1
        %s384 = smul.addr %s383, 16
        %s385 = smul.addr %s384, 8
        %s386 = scalar_lea.vmem %s3, %s385
      $region48: #{basic_block_forward.3} parent=43 // pred_fallthru
        _
      // Predicated region
      $region49: #{basic_block_forward.3} parent=43 // pred_check
        %p387 = pneg %p134
      $region50: #{basic_block_forward.3} parent=43 // pred_check_branch
        %389 = sbr.rel (%p387) target = $region52
      $region51: #{basic_block_forward.3} parent=43 // pred_region
        %p390 = scmp.lt.s32.totalorder %s17, 1
        %s391 = scalar_select %p390, %s17, 1
        %s392 = smul.addr %s391, 16
        %s393 = smul.addr %s392, 8
        %s394 = scalar_lea.vmem %s4, %s393
      $region52: #{basic_block_forward.3} parent=43 // pred_fallthru
        _
    $region44: #{basic_block_forward.3} parent=5 // pred_fallthru
      _
  $region6: #{basic_block_forward.3} parent=0 // loop_footer
    %s15 = sadd.s32 1, %s11
  $region7: #{basic_block_forward.3} parent=0 // loop_footer_branch
    %10 = sbr.rel target = $region3
  $region8: #{basic_block_forward.3} parent=0 // loop_exit
    _

// kernel: basic_block_forward.2
$region0: #{basic_block_forward.2}
  #allocation0 [shape = 'u32[]', space=smem, size = 0x4, offset = 0x4, fixed_abs, tag = 'smem constant byte address 0x4 - core index']
  #allocation1 [shape = 'u32[72,128]{1,0:T(1,128)}', space=vmem, size = 0x9000, scoped, tag = 'internal scratch']
  #allocation2 [shape = 'bf16[1,16,384]{2,1,0:T(8,128)(2,1)}', space=vmem, size = 0x3000, scoped, tag = 'scratch operand']
  #allocation3 [shape = 'f32[1,16,128]{2,1,0:T(8,128)}', space=vmem, size = 0x2000, scoped, tag = 'scratch operand']
  #allocation4 [shape = 'bf16[1,8,384]{2,1,0:T(8,128)(2,1)}', space=vmem, size = 0x1800, scoped, tag = 'scratch operand']
  %s0 = inlined_call_operand.vmem [shape: bf16[2,16,128], index: 0, kind: input, shape index: {}]
  %s1 = inlined_call_operand.vmem [shape: bf16[384,128], index: 1, kind: input, shape index: {}]
  %s2 = inlined_call_operand.vmem [shape: bf16[384,128], index: 2, kind: input, shape index: {}]
  %s3 = inlined_call_operand.vmem [shape: bf16[2,8,128], index: 3, kind: output, shape index: {0}]
  %s4 = inlined_call_operand.vmem [shape: f32[2,1,128], index: 4, kind: output, shape index: {1}]
  %s5 = inlined_call_operand.vmem [shape: f32[2,1,128], index: 5, kind: output, shape index: {2}]
  %6 = xla_tuple %s3, %s4, %s5
  %s7 = sld [smem:[#allocation0]]
  $region61: #{basic_block_forward.2} parent=0
    _
  %s9 = ssub.s32 1, %s7
  %s10 = scalar_select 0, %s9, %s7
  loop: start=0, step=1, limit=4
  $region2: #{basic_block_forward.2} parent=0 // loop_pre_header
    _
  $region3: #{basic_block_forward.2} parent=0 // loop_header
    %s12 = sphi 0, %s16
    %p13 = scmp.ge.s32.totalorder %s12, 4
    %s22 = sphi 0, %s24
    %s25 = sphi 0, %s22
    %s26 = sphi 0, %s25
    %s42 = sphi 0, %s26
    %s46 = sphi 0, %s46
    %s48 = sphi 0, %s46
    %s49 = sphi 0, %s48
    %s63 = sphi 0, %s49
    %s67 = sphi 0, %s67
    %s69 = sphi 0, %s67
    %s70 = sphi 0, %s69
    %s84 = sphi 0, %s70
    %s90 = sphi 0, %s92
    %s93 = sphi 0, %s90
    %s94 = sphi 0, %s93
    %s110 = sphi 0, %s94
    %s116 = sphi 0, %s118
    %s119 = sphi 0, %s116
    %s120 = sphi 0, %s119
    %s136 = sphi 0, %s120
    %s142 = sphi 0, %s144
    %s145 = sphi 0, %s142
    %s146 = sphi 0, %s145
    %s162 = sphi 0, %s146
  $region4: #{basic_block_forward.2} parent=0 // loop_header_branch
    %15 = sbr.rel (%p13) target = $region8
  $region5: #{basic_block_forward.2} parent=0 // loop_body
    %s17 = ssub.s32 %s12, 1
    %s18 = ssub.s32 %s12, 2
    %s19 = sadd.s32 %s12, 1
    %s20 = ssub.s32 %s12, %s19
    %p21 = scmp.eq.s32.totalorder %s20, 0
    %s23 = sadd.s32 %s22, 1
    %s24 = scalar_select %p21, %s22, %s23
    %p27 = pneg %p21
    %p28 = scmp.eq.s32.totalorder %s12, 1
    %p29 = por %p27, %p28
    %p30 = scmp.ne.s32.totalorder %s22, %s25
    %p31 = scmp.eq.s32.totalorder %s12, 0
    %p32 = por %p30, %p31
    %p33 = scmp.ne.s32.totalorder %s22, %s25
    %p34 = scmp.eq.s32.totalorder %s17, 1
    %p35 = por %p33, %p34
    %p36 = scmp.ne.s32.totalorder %s25, %s26
    %p37 = scmp.eq.s32.totalorder %s17, 0
    %p38 = por %p36, %p37
    %p39 = scmp.ne.s32.totalorder %s25, %s26
    %p40 = scmp.eq.s32.totalorder %s18, 1
    %p41 = por %p39, %p40
    %p43 = scmp.ne.s32.totalorder %s26, %s42
    %p44 = scmp.eq.s32.totalorder %s18, 0
    %p45 = por %p43, %p44
    %s47 = sadd.s32 %s46, 1
    %p50 = scmp.eq.s32.totalorder %s12, 1
    %p51 = scmp.ne.s32.totalorder %s46, %s48
    %p52 = scmp.eq.s32.totalorder %s12, 0
    %p53 = por %p51, %p52
    %p54 = scmp.ne.s32.totalorder %s46, %s48
    %p55 = scmp.eq.s32.totalorder %s17, 1
    %p56 = por %p54, %p55
    %p57 = scmp.ne.s32.totalorder %s48, %s49
    %p58 = scmp.eq.s32.totalorder %s17, 0
    %p59 = por %p57, %p58
    %p60 = scmp.ne.s32.totalorder %s48, %s49
    %p61 = scmp.eq.s32.totalorder %s18, 1
    %p62 = por %p60, %p61
    %p64 = scmp.ne.s32.totalorder %s49, %s63
    %p65 = scmp.eq.s32.totalorder %s18, 0
    %p66 = por %p64, %p65
    %s68 = sadd.s32 %s67, 1
    %p71 = scmp.eq.s32.totalorder %s12, 1
    %p72 = scmp.ne.s32.totalorder %s67, %s69
    %p73 = scmp.eq.s32.totalorder %s12, 0
    %p74 = por %p72, %p73
    %p75 = scmp.ne.s32.totalorder %s67, %s69
    %p76 = scmp.eq.s32.totalorder %s17, 1
    %p77 = por %p75, %p76
    %p78 = scmp.ne.s32.totalorder %s69, %s70
    %p79 = scmp.eq.s32.totalorder %s17, 0
    %p80 = por %p78, %p79
    %p81 = scmp.ne.s32.totalorder %s69, %s70
    %p82 = scmp.eq.s32.totalorder %s18, 1
    %p83 = por %p81, %p82
    %p85 = scmp.ne.s32.totalorder %s70, %s84
    %p86 = scmp.eq.s32.totalorder %s18, 0
    %p87 = por %p85, %p86
    %s88 = ssub.s32 %s12, %s19
    %p89 = scmp.eq.s32.totalorder %s88, 0
    %s91 = sadd.s32 %s90, 1
    %s92 = scalar_select %p89, %s90, %s91
    %p95 = pneg %p89
    %p96 = scmp.eq.s32.totalorder %s12, 1
    %p97 = por %p95, %p96
    %p98 = scmp.ne.s32.totalorder %s90, %s93
    %p99 = scmp.eq.s32.totalorder %s12, 0
    %p100 = por %p98, %p99
    %p101 = scmp.ne.s32.totalorder %s90, %s93
    %p102 = scmp.eq.s32.totalorder %s17, 1
    %p103 = por %p101, %p102
    %p104 = scmp.ne.s32.totalorder %s93, %s94
    %p105 = scmp.eq.s32.totalorder %s17, 0
    %p106 = por %p104, %p105
    %p107 = scmp.ne.s32.totalorder %s93, %s94
    %p108 = scmp.eq.s32.totalorder %s18, 1
    %p109 = por %p107, %p108
    %p111 = scmp.ne.s32.totalorder %s94, %s110
    %p112 = scmp.eq.s32.totalorder %s18, 0
    %p113 = por %p111, %p112
    %s114 = ssub.s32 %s12, %s19
    %p115 = scmp.eq.s32.totalorder %s114, 0
    %s117 = sadd.s32 %s116, 1
    %s118 = scalar_select %p115, %s116, %s117
    %p121 = pneg %p115
    %p122 = scmp.eq.s32.totalorder %s12, 1
    %p123 = por %p121, %p122
    %p124 = scmp.ne.s32.totalorder %s116, %s119
    %p125 = scmp.eq.s32.totalorder %s12, 0
    %p126 = por %p124, %p125
    %p127 = scmp.ne.s32.totalorder %s116, %s119
    %p128 = scmp.eq.s32.totalorder %s17, 1
    %p129 = por %p127, %p128
    %p130 = scmp.ne.s32.totalorder %s119, %s120
    %p131 = scmp.eq.s32.totalorder %s17, 0
    %p132 = por %p130, %p131
    %p133 = scmp.ne.s32.totalorder %s119, %s120
    %p134 = scmp.eq.s32.totalorder %s18, 1
    %p135 = por %p133, %p134
    %p137 = scmp.ne.s32.totalorder %s120, %s136
    %p138 = scmp.eq.s32.totalorder %s18, 0
    %p139 = por %p137, %p138
    %s140 = ssub.s32 %s12, %s19
    %p141 = scmp.eq.s32.totalorder %s140, 0
    %s143 = sadd.s32 %s142, 1
    %s144 = scalar_select %p141, %s142, %s143
    %p147 = pneg %p141
    %p148 = scmp.eq.s32.totalorder %s12, 1
    %p149 = por %p147, %p148
    %p150 = scmp.ne.s32.totalorder %s142, %s145
    %p151 = scmp.eq.s32.totalorder %s12, 0
    %p152 = por %p150, %p151
    %p153 = scmp.ne.s32.totalorder %s142, %s145
    %p154 = scmp.eq.s32.totalorder %s17, 1
    %p155 = por %p153, %p154
    %p156 = scmp.ne.s32.totalorder %s145, %s146
    %p157 = scmp.eq.s32.totalorder %s17, 0
    %p158 = por %p156, %p157
    %p159 = scmp.ne.s32.totalorder %s145, %s146
    %p160 = scmp.eq.s32.totalorder %s18, 1
    %p161 = por %p159, %p160
    %p163 = scmp.ne.s32.totalorder %s146, %s162
    %p164 = scmp.eq.s32.totalorder %s18, 0
    %p165 = por %p163, %p164
    %p166 = scmp.le.s32.totalorder 1, %s12
    %p167 = scmp.lt.s32.totalorder %s12, 3
    %p168 = pnand %p166, %p167
    %p169 = pneg %p168
    // Predicated region
    $region9: #{basic_block_forward.2} parent=5 // pred_check
      _
    $region10: #{basic_block_forward.2} parent=5 // pred_check_branch
      %171 = sbr.rel (%p168) target = $region12
    $region11: #{basic_block_forward.2} parent=5 // pred_region
      %s172 = ssub.s32 %s12, 1
      // Predicated region
      $region13: #{basic_block_forward.2} parent=11 // pred_check
        %p173 = pneg %p59
      $region14: #{basic_block_forward.2} parent=11 // pred_check_branch
        %175 = sbr.rel (%p173) target = $region16
      $region15: #{basic_block_forward.2} parent=11 // pred_region
        _
      $region16: #{basic_block_forward.2} parent=11 // pred_fallthru
        _
      // Predicated region
      $region17: #{basic_block_forward.2} parent=11 // pred_check
        %p176 = pneg %p80
      $region18: #{basic_block_forward.2} parent=11 // pred_check_branch
        %178 = sbr.rel (%p176) target = $region20
      $region19: #{basic_block_forward.2} parent=11 // pred_region
        _
      $region20: #{basic_block_forward.2} parent=11 // pred_fallthru
        _
    $region12: #{basic_block_forward.2} parent=5 // pred_fallthru
      _
    %p179 = scmp.lt.s32.totalorder %s12, 2
    // Predicated region
    $region21: #{basic_block_forward.2} parent=5 // pred_check
      %p180 = pneg %p179
    $region22: #{basic_block_forward.2} parent=5 // pred_check_branch
      %182 = sbr.rel (%p180) target = $region24
    $region23: #{basic_block_forward.2} parent=5 // pred_region
      // Predicated region
      $region25: #{basic_block_forward.2} parent=23 // pred_check
        %p183 = pneg %p32
      $region26: #{basic_block_forward.2} parent=23 // pred_check_branch
        %185 = sbr.rel (%p183) target = $region28
      $region27: #{basic_block_forward.2} parent=23 // pred_region
        %p186 = scmp.lt.s32.totalorder %s12, 1
        %s187 = scalar_select %p186, %s12, 1
        %s188 = smul.addr %s187, 2
        %s189 = smul.addr %s188, 4
        %s190 = scalar_lea.vmem %s0, %s189
      $region28: #{basic_block_forward.2} parent=23 // pred_fallthru
        _
    $region24: #{basic_block_forward.2} parent=5 // pred_fallthru
      _
    %p191 = scmp.le.s32.totalorder 1, %s12
    %p192 = scmp.lt.s32.totalorder %s12, 3
    %p193 = pnand %p191, %p192
    %p194 = pneg %p193
    // Predicated region
    $region29: #{basic_block_forward.2} parent=5 // pred_check
      _
    $region30: #{basic_block_forward.2} parent=5 // pred_check_branch
      %196 = sbr.rel (%p193) target = $region32
    $region31: #{basic_block_forward.2} parent=5 // pred_region
      %s197 = ssub.s32 %s12, 1
      %p198 = scmp.lt.s32.totalorder %s17, 1
      %s199 = scalar_select %p198, %s17, 1
      %s200 = smul.addr %s199, 2
      %s201 = smul.addr %s200, 4
      %s202 = scalar_lea.vmem %s0, %s201
      %p203 = pneg %p38
      %p204 = pneg %p35
      %p205 = pneg %p59
      %p206 = pneg %p56
      %p207 = pneg %p80
      %p208 = pneg %p77
      %p209 = pneg %p106
      %p210 = pneg %p103
      %p211 = scmp.lt.s32.totalorder %s17, 1
      %s212 = scalar_select %p211, %s17, 1
      %s213 = smul.addr %s212, 4
      %s214 = scalar_lea.vmem %s3, %s213
      %p215 = pneg %p132
      %p216 = pneg %p129
      %p217 = scmp.lt.s32.totalorder %s17, 1
      %s218 = scalar_select %p217, %s17, 1
      %s219 = scalar_lea.vmem %s4, %s218
      %p220 = pneg %p158
      %p221 = pneg %p155
      %p222 = scmp.lt.s32.totalorder %s17, 1
      %s223 = scalar_select %p222, %s17, 1
      %s224 = scalar_lea.vmem %s5, %s223
      %p225 = scmp.lt.s32.totalorder %s17, 1
      %s226 = scalar_select %p225, %s17, 1
      %s227 = smul.addr %s226, 2
      %s228 = smul.addr %s227, 4
      %s229 = scalar_lea.vmem %s0, %s228
      %p230 = scmp.lt.s32.totalorder %s17, 1
      %s231 = scalar_select %p230, %s17, 1
      %s232 = smul.addr %s231, 4
      %s233 = scalar_lea.vmem %s3, %s232
      %p234 = scmp.lt.s32.totalorder %s17, 1
      %s235 = scalar_select %p234, %s17, 1
      %s236 = scalar_lea.vmem %s4, %s235
      %p237 = scmp.lt.s32.totalorder %s17, 1
      %s238 = scalar_select %p237, %s17, 1
      %s239 = scalar_lea.vmem %s5, %s238
      %v241 = vld [vmem:[%s229] sm:$0xf]
      %v242 = vld [vmem:[%s229 + $0x4] sm:$0xf]
      %243 = vst [vmem:[#allocation2 + $0x4] sm:$0xf] %v241
      %244 = vst [vmem:[#allocation2 + $0x10] sm:$0xf] %v242
      %vm245 = vcmask 1040384
      %vm246 = vsmask.f32 256
      %vm247 = vmand %vm245, %vm246
      %v248 = vld [vmem:[#allocation2] sm:$0x1]
      %v249 = vsel %vm247, 0, %v248
      %250 = vst [vmem:[#allocation2] sm:$0x1] %v249
      %vm251 = vsmask.f32 4368
      %vm252 = vmor %vm246, %vm251
      %v254 = vshrl.u32 %v241, 16
      %v256 = vrot.slane %v254, 7
      %v257 = vshll.u32 %v241, 16
      %v259 = vor.u32 %v256, %v257
      %v260 = vrot.slane %v256, 4
      %v262 = vshrl.u32 %v242, 16
      %v264 = vrot.slane %v262, 7
      %v265 = vshll.u32 %v242, 16
      %v267 = vor.u32 %v264, %v265
      %v268 = vsel %vm252, %v260, %v267
      %vm271 = vcmask 1043456
      %vm272 = vsmask.f32 7938
      %vm273 = vmand %vm271, %vm272
      %v274 = vld [vmem:[#allocation2] sm:$0xf]
      %v275 = vsel %vm273, %v259, %v274
      %276 = vst [vmem:[#allocation2] sm:$0xf] %v275
      %277 = vst [vmem:[#allocation2 + $0xc] sm:$0xf] %v268
      %vm278 = vsmask.f32 3328
      %vm279 = vsmask.f32 7440
      %vm280 = vmor %vm278, %vm279
      %v281 = vrot.slane %v254, 4
      %v282 = vrot.slane %v257, 5
      %v283 = vor.u32 %v281, %v282
      %v284 = vrot.slane %v283, 4
      %v285 = vrot.slane %v265, 5
      %v286 = vsel %vm280, %v284, %v285
      %v287 = vrot.slane %v262, 4
      %v288 = vor.u32 %v287, %v285
      %v289 = vrot.slane %v288, 4
      %292 = vst [vmem:[#allocation2 + $0x8] sm:$0xf] %v286
      %vm293 = vmand %vm271, %vm278
      %v294 = vld [vmem:[#allocation2 + $0x14] sm:$0xf]
      %v295 = vsel %vm293, %v289, %v294
      %296 = vst [vmem:[#allocation2 + $0x14] sm:$0xf] %v295
      %vm297 = vcmask 1043459
      %vm298 = vsmask.f32 7950
      %vm299 = vmand %vm297, %vm298
      %v300 = vld [vmem:[#allocation2 + $0x14] sm:$0x8]
      %v301 = vsel %vm299, 0, %v300
      %302 = vst [vmem:[#allocation2 + $0x14] sm:$0x8] %v301
      %v303 = vld [vmem:[#allocation2] sm:$0xff]
      %v304 = vld [vmem:[#allocation2 + $0x8] sm:$0xf]
      %v305 = vld [vmem:[#allocation2 + $0xc] sm:$0xff]
      %v306 = vld [vmem:[#allocation2 + $0x14] sm:$0xf]
      %v307 = vld [vmem:[%s1] sm:$0xf]
      %v308 = vld [vmem:[%s1 + $0x4] sm:$0xf]
      %v309 = vld [vmem:[%s1 + $0x8] sm:$0xf]
      %v310 = vld [vmem:[%s1 + $0xc] sm:$0xf]
      %v311 = vld [vmem:[%s1 + $0x10] sm:$0xf]
      %v312 = vld [vmem:[%s1 + $0x14] sm:$0xf]
      %v313 = vld [vmem:[%s1 + $0x18] sm:$0xf]
      %v314 = vld [vmem:[%s1 + $0x1c] sm:$0xf]
      %v315 = vld [vmem:[%s1 + $0x20] sm:$0xf]
      %v316 = vld [vmem:[%s1 + $0x24] sm:$0xf]
      %v317 = vld [vmem:[%s1 + $0x28] sm:$0xf]
      %v318 = vld [vmem:[%s1 + $0x2c] sm:$0xf]
      %v319 = vld [vmem:[%s1 + $0x30] sm:$0xf]
      %v320 = vld [vmem:[%s1 + $0x34] sm:$0xf]
      %v321 = vld [vmem:[%s1 + $0x38] sm:$0xf]
      %v322 = vld [vmem:[%s1 + $0x3c] sm:$0xf]
      %v323 = vld [vmem:[%s1 + $0x40] sm:$0xf]
      %v324 = vld [vmem:[%s1 + $0x44] sm:$0xf]
      %v325 = vld [vmem:[%s1 + $0x48] sm:$0xf]
      %v326 = vld [vmem:[%s1 + $0x4c] sm:$0xf]
      %v327 = vld [vmem:[%s1 + $0x50] sm:$0xf]
      %v328 = vld [vmem:[%s1 + $0x54] sm:$0xf]
      %v329 = vld [vmem:[%s1 + $0x58] sm:$0xf]
      %v330 = vld [vmem:[%s1 + $0x5c] sm:$0xf]
      %v331 = vld [vmem:[%s1 + $0x60] sm:$0xf]
      %v332 = vld [vmem:[%s1 + $0x64] sm:$0xf]
      %v333 = vld [vmem:[%s1 + $0x68] sm:$0xf]
      %v334 = vld [vmem:[%s1 + $0x6c] sm:$0xf]
      %v335 = vld [vmem:[%s1 + $0x70] sm:$0xf]
      %v336 = vld [vmem:[%s1 + $0x74] sm:$0xf]
      %v337 = vld [vmem:[%s1 + $0x78] sm:$0xf]
      %v338 = vld [vmem:[%s1 + $0x7c] sm:$0xf]
      %v339 = vld [vmem:[%s1 + $0x80] sm:$0xf]
      %v340 = vld [vmem:[%s1 + $0x84] sm:$0xf]
      %v341 = vld [vmem:[%s1 + $0x88] sm:$0xf]
      %v342 = vld [vmem:[%s1 + $0x8c] sm:$0xf]
      %v343 = vld [vmem:[%s1 + $0x90] sm:$0xf]
      %v344 = vld [vmem:[%s1 + $0x94] sm:$0xf]
      %v345 = vld [vmem:[%s1 + $0x98] sm:$0xf]
      %v346 = vld [vmem:[%s1 + $0x9c] sm:$0xf]
      %v347 = vld [vmem:[%s1 + $0xa0] sm:$0xf]
      %v348 = vld [vmem:[%s1 + $0xa4] sm:$0xf]
      %v349 = vld [vmem:[%s1 + $0xa8] sm:$0xf]
      %v350 = vld [vmem:[%s1 + $0xac] sm:$0xf]
      %v351 = vld [vmem:[%s1 + $0xb0] sm:$0xf]
      %v352 = vld [vmem:[%s1 + $0xb4] sm:$0xf]
      %v353 = vld [vmem:[%s1 + $0xb8] sm:$0xf]
      %v354 = vld [vmem:[%s1 + $0xbc] sm:$0xf]
      %v359 = vunpack.c.l.b16 %v303
      %v360 = vunpack.c.h.b16 %v303
      %v361 = vunpack.c.l.b16 %v304
      %v362 = vunpack.c.l.b16 %v305
      %v363 = vunpack.c.h.b16 %v305
      %v364 = vunpack.c.l.b16 %v306
      %v365 = vpack.c.b16 %v362, %v359
      %v366 = vpack.c.b16 %v363, %v360
      %v367 = vpack.c.b16 %v364, %v361
      %v419 = vunpack.c.l.b16 %v307
      %v420 = vunpack.c.l.b16 %v308
      %v421 = vunpack.c.l.b16 %v309
      %v422 = vunpack.c.l.b16 %v310
      %v423 = vunpack.c.l.b16 %v311
      %v424 = vunpack.c.l.b16 %v312
      %v425 = vunpack.c.l.b16 %v313
      %v426 = vunpack.c.l.b16 %v314
      %v427 = vunpack.c.l.b16 %v315
      %v428 = vunpack.c.l.b16 %v316
      %v429 = vunpack.c.l.b16 %v317
      %v430 = vunpack.c.l.b16 %v318
      %v431 = vunpack.c.l.b16 %v319
      %v432 = vunpack.c.l.b16 %v320
      %v433 = vunpack.c.l.b16 %v321
      %v434 = vunpack.c.l.b16 %v322
      %v435 = vunpack.c.l.b16 %v323
      %v436 = vunpack.c.l.b16 %v324
      %v437 = vunpack.c.l.b16 %v325
      %v438 = vunpack.c.l.b16 %v326
      %v439 = vunpack.c.l.b16 %v327
      %v440 = vunpack.c.l.b16 %v328
      %v441 = vunpack.c.l.b16 %v329
      %v442 = vunpack.c.l.b16 %v330
      %v443 = vunpack.c.l.b16 %v331
      %v444 = vunpack.c.l.b16 %v332
      %v445 = vunpack.c.l.b16 %v333
      %v446 = vunpack.c.l.b16 %v334
      %v447 = vunpack.c.l.b16 %v335
      %v448 = vunpack.c.l.b16 %v336
      %v449 = vunpack.c.l.b16 %v337
      %v450 = vunpack.c.l.b16 %v338
      %v451 = vunpack.c.l.b16 %v339
      %v452 = vunpack.c.l.b16 %v340
      %v453 = vunpack.c.l.b16 %v341
      %v454 = vunpack.c.l.b16 %v342
      %v455 = vunpack.c.l.b16 %v343
      %v456 = vunpack.c.l.b16 %v344
      %v457 = vunpack.c.l.b16 %v345
      %v458 = vunpack.c.l.b16 %v346
      %v459 = vunpack.c.l.b16 %v347
      %v460 = vunpack.c.l.b16 %v348
      %v461 = vunpack.c.l.b16 %v349
      %v462 = vunpack.c.l.b16 %v350
      %v463 = vunpack.c.l.b16 %v351
      %v464 = vunpack.c.l.b16 %v352
      %v465 = vunpack.c.l.b16 %v353
      %v466 = vunpack.c.l.b16 %v354
      %v467 = vpack.c.b16 %v420, %v419
      %v468 = vpack.c.b16 %v422, %v421
      %v469 = vpack.c.b16 %v424, %v423
      %v470 = vpack.c.b16 %v426, %v425
      %v471 = vpack.c.b16 %v428, %v427
      %v472 = vpack.c.b16 %v430, %v429
      %v473 = vpack.c.b16 %v432, %v431
      %v474 = vpack.c.b16 %v434, %v433
      %v475 = vpack.c.b16 %v436, %v435
      %v476 = vpack.c.b16 %v438, %v437
      %v477 = vpack.c.b16 %v440, %v439
      %v478 = vpack.c.b16 %v442, %v441
      %v479 = vpack.c.b16 %v444, %v443
      %v480 = vpack.c.b16 %v446, %v445
      %v481 = vpack.c.b16 %v448, %v447
      %v482 = vpack.c.b16 %v450, %v449
      %v483 = vpack.c.b16 %v452, %v451
      %v484 = vpack.c.b16 %v454, %v453
      %v485 = vpack.c.b16 %v456, %v455
      %v486 = vpack.c.b16 %v458, %v457
      %v487 = vpack.c.b16 %v460, %v459
      %v488 = vpack.c.b16 %v462, %v461
      %v489 = vpack.c.b16 %v464, %v463
      %v490 = vpack.c.b16 %v466, %v465
      %515 = vmatpush.bf16.msra.mxu0 %v474
      %516 = vmatpush.bf16.msra.mxu0 %v473
      %517 = vmatpush.bf16.msra.mxu0 %v472
      %518 = vmatpush.bf16.msra.mxu0 %v471
      %519 = vmatpush.bf16.msra.mxu0 %v470
      %520 = vmatpush.bf16.msra.mxu0 %v469
      %521 = vmatpush.bf16.msra.mxu0 %v468
      %522 = vmatpush.bf16.msra.mxu0 %v467
      %523 = vmatmul.bf16.gmra.mxu0 %v365
      %v524 = vpop.f32.mrf.mxu0
      %v525 = vadd.f32 0.0, %v524
      %v526 = vpop.f32.mrf.mxu0
      %v527 = vadd.f32 0.0, %v526
      %528 = vdwg.mxu0
      %529 = vmatpush.bf16.msra.mxu0 %v482
      %530 = vmatpush.bf16.msra.mxu0 %v481
      %531 = vmatpush.bf16.msra.mxu0 %v480
      %532 = vmatpush.bf16.msra.mxu0 %v479
      %533 = vmatpush.bf16.msra.mxu0 %v478
      %534 = vmatpush.bf16.msra.mxu0 %v477
      %535 = vmatpush.bf16.msra.mxu0 %v476
      %536 = vmatpush.bf16.msra.mxu0 %v475
      %537 = vmatmul.bf16.gmra.mxu0 %v366
      %v538 = vpop.f32.mrf.mxu0
      %v539 = vadd.f32 %v525, %v538
      %v540 = vpop.f32.mrf.mxu0
      %v541 = vadd.f32 %v527, %v540
      %542 = vdwg.mxu0
      %543 = vmatpush.bf16.msra.mxu0 %v490
      %544 = vmatpush.bf16.msra.mxu0 %v489
      %545 = vmatpush.bf16.msra.mxu0 %v488
      %546 = vmatpush.bf16.msra.mxu0 %v487
      %547 = vmatpush.bf16.msra.mxu0 %v486
      %548 = vmatpush.bf16.msra.mxu0 %v485
      %549 = vmatpush.bf16.msra.mxu0 %v484
      %550 = vmatpush.bf16.msra.mxu0 %v483
      %551 = vmatmul.bf16.gmra.mxu0 %v367
      %v552 = vpop.f32.mrf.mxu0
      %v553 = vadd.f32 %v539, %v552
      %v554 = vpop.f32.mrf.mxu0
      %v555 = vadd.f32 %v541, %v554
      %556 = vdwg.mxu0
      %557 = vst [vmem:[#allocation3] sm:$0xff] %v553
      %558 = vst [vmem:[#allocation3 + $0x8] sm:$0xff] %v555
      %v559 = vld [vmem:[#allocation3] ss:$2 sm:$0xff]
      %s560 = scalar_lea.vmem [#allocation3], 1
      %v561 = vld [vmem:[%s560] ss:$2 sm:$0xff]
      %v562 = vpack.c.bf16 %v559, %v559
      %563 = vst [vmem:[#allocation4 + $0x4] sm:$0xf] %v562
      %v564 = vld [vmem:[#allocation4] sm:$0x1]
      %v565 = vsel %vm247, 0, %v564
      %566 = vst [vmem:[#allocation4] sm:$0x1] %v565
      %v567 = vpack.c.bf16 %v561, %v561
      %v569 = vshrl.u32 %v567, 16
      %v571 = vrot.slane %v569, 7
      %v572 = vshll.u32 %v567, 16
      %v574 = vor.u32 %v571, %v572
      %v576 = vld [vmem:[#allocation4] sm:$0xf]
      %v577 = vsel %vm273, %v574, %v576
      %578 = vst [vmem:[#allocation4] sm:$0xf] %v577
      %579 = vst [vmem:[#allocation4 + $0x8] sm:$0xf] %v567
      %v580 = vld [vmem:[#allocation4] sm:$0xff]
      %v581 = vld [vmem:[#allocation4 + $0x8] sm:$0xf]
      %v582 = vld [vmem:[%s2] sm:$0xf]
      %v583 = vld [vmem:[%s2 + $0x4] sm:$0xf]
      %v584 = vld [vmem:[%s2 + $0x8] sm:$0xf]
      %v585 = vld [vmem:[%s2 + $0xc] sm:$0xf]
      %v586 = vld [vmem:[%s2 + $0x10] sm:$0xf]
      %v587 = vld [vmem:[%s2 + $0x14] sm:$0xf]
      %v588 = vld [vmem:[%s2 + $0x18] sm:$0xf]
      %v589 = vld [vmem:[%s2 + $0x1c] sm:$0xf]
      %v590 = vld [vmem:[%s2 + $0x20] sm:$0xf]
      %v591 = vld [vmem:[%s2 + $0x24] sm:$0xf]
      %v592 = vld [vmem:[%s2 + $0x28] sm:$0xf]
      %v593 = vld [vmem:[%s2 + $0x2c] sm:$0xf]
      %v594 = vld [vmem:[%s2 + $0x30] sm:$0xf]
      %v595 = vld [vmem:[%s2 + $0x34] sm:$0xf]
      %v596 = vld [vmem:[%s2 + $0x38] sm:$0xf]
      %v597 = vld [vmem:[%s2 + $0x3c] sm:$0xf]
      %v598 = vld [vmem:[%s2 + $0x40] sm:$0xf]
      %v599 = vld [vmem:[%s2 + $0x44] sm:$0xf]
      %v600 = vld [vmem:[%s2 + $0x48] sm:$0xf]
      %v601 = vld [vmem:[%s2 + $0x4c] sm:$0xf]
      %v602 = vld [vmem:[%s2 + $0x50] sm:$0xf]
      %v603 = vld [vmem:[%s2 + $0x54] sm:$0xf]
      %v604 = vld [vmem:[%s2 + $0x58] sm:$0xf]
      %v605 = vld [vmem:[%s2 + $0x5c] sm:$0xf]
      %v606 = vld [vmem:[%s2 + $0x60] sm:$0xf]
      %v607 = vld [vmem:[%s2 + $0x64] sm:$0xf]
      %v608 = vld [vmem:[%s2 + $0x68] sm:$0xf]
      %v609 = vld [vmem:[%s2 + $0x6c] sm:$0xf]
      %v610 = vld [vmem:[%s2 + $0x70] sm:$0xf]
      %v611 = vld [vmem:[%s2 + $0x74] sm:$0xf]
      %v612 = vld [vmem:[%s2 + $0x78] sm:$0xf]
      %v613 = vld [vmem:[%s2 + $0x7c] sm:$0xf]
      %v614 = vld [vmem:[%s2 + $0x80] sm:$0xf]
      %v615 = vld [vmem:[%s2 + $0x84] sm:$0xf]
      %v616 = vld [vmem:[%s2 + $0x88] sm:$0xf]
      %v617 = vld [vmem:[%s2 + $0x8c] sm:$0xf]
      %v618 = vld [vmem:[%s2 + $0x90] sm:$0xf]
      %v619 = vld [vmem:[%s2 + $0x94] sm:$0xf]
      %v620 = vld [vmem:[%s2 + $0x98] sm:$0xf]
      %v621 = vld [vmem:[%s2 + $0x9c] sm:$0xf]
      %v622 = vld [vmem:[%s2 + $0xa0] sm:$0xf]
      %v623 = vld [vmem:[%s2 + $0xa4] sm:$0xf]
      %v624 = vld [vmem:[%s2 + $0xa8] sm:$0xf]
      %v625 = vld [vmem:[%s2 + $0xac] sm:$0xf]
      %v626 = vld [vmem:[%s2 + $0xb0] sm:$0xf]
      %v627 = vld [vmem:[%s2 + $0xb4] sm:$0xf]
      %v628 = vld [vmem:[%s2 + $0xb8] sm:$0xf]
      %v629 = vld [vmem:[%s2 + $0xbc] sm:$0xf]
      %v632 = vunpack.c.l.b16 %v580
      %v633 = vunpack.c.h.b16 %v580
      %v634 = vunpack.c.l.b16 %v581
      %v635 = vpack.c.b16 %v632, %v632
      %v636 = vpack.c.b16 %v633, %v633
      %v637 = vpack.c.b16 %v634, %v634
      %v689 = vunpack.c.l.b16 %v582
      %v690 = vunpack.c.l.b16 %v583
      %v691 = vunpack.c.l.b16 %v584
      %v692 = vunpack.c.l.b16 %v585
      %v693 = vunpack.c.l.b16 %v586
      %v694 = vunpack.c.l.b16 %v587
      %v695 = vunpack.c.l.b16 %v588
      %v696 = vunpack.c.l.b16 %v589
      %v697 = vunpack.c.l.b16 %v590
      %v698 = vunpack.c.l.b16 %v591
      %v699 = vunpack.c.l.b16 %v592
      %v700 = vunpack.c.l.b16 %v593
      %v701 = vunpack.c.l.b16 %v594
      %v702 = vunpack.c.l.b16 %v595
      %v703 = vunpack.c.l.b16 %v596
      %v704 = vunpack.c.l.b16 %v597
      %v705 = vunpack.c.l.b16 %v598
      %v706 = vunpack.c.l.b16 %v599
      %v707 = vunpack.c.l.b16 %v600
      %v708 = vunpack.c.l.b16 %v601
      %v709 = vunpack.c.l.b16 %v602
      %v710 = vunpack.c.l.b16 %v603
      %v711 = vunpack.c.l.b16 %v604
      %v712 = vunpack.c.l.b16 %v605
      %v713 = vunpack.c.l.b16 %v606
      %v714 = vunpack.c.l.b16 %v607
      %v715 = vunpack.c.l.b16 %v608
      %v716 = vunpack.c.l.b16 %v609
      %v717 = vunpack.c.l.b16 %v610
      %v718 = vunpack.c.l.b16 %v611
      %v719 = vunpack.c.l.b16 %v612
      %v720 = vunpack.c.l.b16 %v613
      %v721 = vunpack.c.l.b16 %v614
      %v722 = vunpack.c.l.b16 %v615
      %v723 = vunpack.c.l.b16 %v616
      %v724 = vunpack.c.l.b16 %v617
      %v725 = vunpack.c.l.b16 %v618
      %v726 = vunpack.c.l.b16 %v619
      %v727 = vunpack.c.l.b16 %v620
      %v728 = vunpack.c.l.b16 %v621
      %v729 = vunpack.c.l.b16 %v622
      %v730 = vunpack.c.l.b16 %v623
      %v731 = vunpack.c.l.b16 %v624
      %v732 = vunpack.c.l.b16 %v625
      %v733 = vunpack.c.l.b16 %v626
      %v734 = vunpack.c.l.b16 %v627
      %v735 = vunpack.c.l.b16 %v628
      %v736 = vunpack.c.l.b16 %v629
      %v737 = vpack.c.b16 %v690, %v689
      %v738 = vpack.c.b16 %v692, %v691
      %v739 = vpack.c.b16 %v694, %v693
      %v740 = vpack.c.b16 %v696, %v695
      %v741 = vpack.c.b16 %v698, %v697
      %v742 = vpack.c.b16 %v700, %v699
      %v743 = vpack.c.b16 %v702, %v701
      %v744 = vpack.c.b16 %v704, %v703
      %v745 = vpack.c.b16 %v706, %v705
      %v746 = vpack.c.b16 %v708, %v707
      %v747 = vpack.c.b16 %v710, %v709
      %v748 = vpack.c.b16 %v712, %v711
      %v749 = vpack.c.b16 %v714, %v713
      %v750 = vpack.c.b16 %v716, %v715
      %v751 = vpack.c.b16 %v718, %v717
      %v752 = vpack.c.b16 %v720, %v719
      %v753 = vpack.c.b16 %v722, %v721
      %v754 = vpack.c.b16 %v724, %v723
      %v755 = vpack.c.b16 %v726, %v725
      %v756 = vpack.c.b16 %v728, %v727
      %v757 = vpack.c.b16 %v730, %v729
      %v758 = vpack.c.b16 %v732, %v731
      %v759 = vpack.c.b16 %v734, %v733
      %v760 = vpack.c.b16 %v736, %v735
      %785 = vmatpush.bf16.msra.mxu0 %v744
      %786 = vmatpush.bf16.msra.mxu0 %v743
      %787 = vmatpush.bf16.msra.mxu0 %v742
      %788 = vmatpush.bf16.msra.mxu0 %v741
      %789 = vmatpush.bf16.msra.mxu0 %v740
      %790 = vmatpush.bf16.msra.mxu0 %v739
      %791 = vmatpush.bf16.msra.mxu0 %v738
      %792 = vmatpush.bf16.msra.mxu0 %v737
      %793 = vmatmul.bf16.gmra.mxu0 %v635
      %v794 = vpop.f32.mrf.mxu0
      %v795 = vadd.f32 0.0, %v794
      %v796 = vpop.f32.mrf.mxu0
      %797 = vdwg.mxu0
      %798 = vmatpush.bf16.msra.mxu0 %v752
      %799 = vmatpush.bf16.msra.mxu0 %v751
      %800 = vmatpush.bf16.msra.mxu0 %v750
      %801 = vmatpush.bf16.msra.mxu0 %v749
      %802 = vmatpush.bf16.msra.mxu0 %v748
      %803 = vmatpush.bf16.msra.mxu0 %v747
      %804 = vmatpush.bf16.msra.mxu0 %v746
      %805 = vmatpush.bf16.msra.mxu0 %v745
      %806 = vmatmul.bf16.gmra.mxu0 %v636
      %v807 = vpop.f32.mrf.mxu0
      %v808 = vadd.f32 %v795, %v807
      %v809 = vpop.f32.mrf.mxu0
      %810 = vdwg.mxu0
      %811 = vmatpush.bf16.msra.mxu0 %v760
      %812 = vmatpush.bf16.msra.mxu0 %v759
      %813 = vmatpush.bf16.msra.mxu0 %v758
      %814 = vmatpush.bf16.msra.mxu0 %v757
      %815 = vmatpush.bf16.msra.mxu0 %v756
      %816 = vmatpush.bf16.msra.mxu0 %v755
      %817 = vmatpush.bf16.msra.mxu0 %v754
      %818 = vmatpush.bf16.msra.mxu0 %v753
      %819 = vmatmul.bf16.gmra.mxu0 %v637
      %v820 = vpop.f32.mrf.mxu0
      %v821 = vadd.f32 %v808, %v820
      %v822 = vpop.f32.mrf.mxu0
      %823 = vdwg.mxu0
      %v824 = vrot.slane %v821, 4
      %v825 = vadd.f32 %v821, %v824
      %v826 = vrot.slane %v825, 2
      %v827 = vadd.f32 %v825, %v826
      %v828 = vrot.slane %v827, 1
      %v829 = vadd.f32 %v827, %v828
      %830 = vst [vmem:[%s236] sm:$0x1] %v829
      %v831 = vmul.f32 %v821, %v821
      %v832 = vrot.slane %v831, 4
      %v833 = vadd.f32 %v831, %v832
      %v834 = vrot.slane %v833, 2
      %v835 = vadd.f32 %v833, %v834
      %v836 = vrot.slane %v835, 1
      %v837 = vadd.f32 %v835, %v836
      %838 = vst [vmem:[%s239] sm:$0x1] %v837
      %v839 = vpack.c.bf16 %v821, %v821
      %840 = vst [vmem:[%s233] sm:$0xf] %v839
      %p841 = scmp.lt.s32.totalorder %s17, 1
      %s842 = scalar_select %p841, %s17, 1
      %s843 = smul.addr %s842, 4
      %s844 = scalar_lea.vmem %s3, %s843
      %p845 = scmp.lt.s32.totalorder %s17, 1
      %s846 = scalar_select %p845, %s17, 1
      %s847 = scalar_lea.vmem %s4, %s846
      %p848 = scmp.lt.s32.totalorder %s17, 1
      %s849 = scalar_select %p848, %s17, 1
      %s850 = scalar_lea.vmem %s5, %s849
      // Predicated region
      $region33: #{basic_block_forward.2} parent=31 // pred_check
        %p851 = pneg %p103
      $region34: #{basic_block_forward.2} parent=31 // pred_check_branch
        %853 = sbr.rel (%p851) target = $region36
      $region35: #{basic_block_forward.2} parent=31 // pred_region
        _
      $region36: #{basic_block_forward.2} parent=31 // pred_fallthru
        _
      // Predicated region
      $region37: #{basic_block_forward.2} parent=31 // pred_check
        %p854 = pneg %p129
      $region38: #{basic_block_forward.2} parent=31 // pred_check_branch
        %856 = sbr.rel (%p854) target = $region40
      $region39: #{basic_block_forward.2} parent=31 // pred_region
        _
      $region40: #{basic_block_forward.2} parent=31 // pred_fallthru
        _
      // Predicated region
      $region41: #{basic_block_forward.2} parent=31 // pred_check
        %p857 = pneg %p155
      $region42: #{basic_block_forward.2} parent=31 // pred_check_branch
        %859 = sbr.rel (%p857) target = $region44
      $region43: #{basic_block_forward.2} parent=31 // pred_region
        _
      $region44: #{basic_block_forward.2} parent=31 // pred_fallthru
        _
    $region32: #{basic_block_forward.2} parent=5 // pred_fallthru
      _
    %p860 = scmp.le.s32.totalorder 2, %s12
    // Predicated region
    $region45: #{basic_block_forward.2} parent=5 // pred_check
      %p861 = pneg %p860
    $region46: #{basic_block_forward.2} parent=5 // pred_check_branch
      %863 = sbr.rel (%p861) target = $region48
    $region47: #{basic_block_forward.2} parent=5 // pred_region
      %s864 = ssub.s32 %s12, 2
      // Predicated region
      $region49: #{basic_block_forward.2} parent=47 // pred_check
        %p865 = pneg %p109
      $region50: #{basic_block_forward.2} parent=47 // pred_check_branch
        %867 = sbr.rel (%p865) target = $region52
      $region51: #{basic_block_forward.2} parent=47 // pred_region
        %p868 = scmp.lt.s32.totalorder %s18, 1
        %s869 = scalar_select %p868, %s18, 1
        %s870 = smul.addr %s869, 4
        %s871 = scalar_lea.vmem %s3, %s870
      $region52: #{basic_block_forward.2} parent=47 // pred_fallthru
        _
      // Predicated region
      $region53: #{basic_block_forward.2} parent=47 // pred_check
        %p872 = pneg %p135
      $region54: #{basic_block_forward.2} parent=47 // pred_check_branch
        %874 = sbr.rel (%p872) target = $region56
      $region55: #{basic_block_forward.2} parent=47 // pred_region
        %p875 = scmp.lt.s32.totalorder %s18, 1
        %s876 = scalar_select %p875, %s18, 1
        %s877 = scalar_lea.vmem %s4, %s876
      $region56: #{basic_block_forward.2} parent=47 // pred_fallthru
        _
      // Predicated region
      $region57: #{basic_block_forward.2} parent=47 // pred_check
        %p878 = pneg %p161
      $region58: #{basic_block_forward.2} parent=47 // pred_check_branch
        %880 = sbr.rel (%p878) target = $region60
      $region59: #{basic_block_forward.2} parent=47 // pred_region
        %p881 = scmp.lt.s32.totalorder %s18, 1
        %s882 = scalar_select %p881, %s18, 1
        %s883 = scalar_lea.vmem %s5, %s882
      $region60: #{basic_block_forward.2} parent=47 // pred_fallthru
        _
    $region48: #{basic_block_forward.2} parent=5 // pred_fallthru
      _
  $region6: #{basic_block_forward.2} parent=0 // loop_footer
    %s16 = sadd.s32 1, %s12
  $region7: #{basic_block_forward.2} parent=0 // loop_footer_branch
    %11 = sbr.rel target = $region3
  $region8: #{basic_block_forward.2} parent=0 // loop_exit
    _

</llo_original>
